<compile_context>
chip_gen: v5e
topology: v5e:2x2
jax: 0.10.0
libtpu: 0.0.40
codegen_flags: <defaults>
</compile_context>

<pallas_src>
import jax
import jax.numpy as jnp
from jax.experimental import pallas as pl
from jax.experimental.pallas import tpu as pltpu

BN_EPS = 1e-5
EDGE_TILE = 128   # E-tile: multiple of 128 so A's (N, tE) block is lane-aligned


# ----------------------------- fused Pallas kernel ----------------------------------


def _fused_encoder_kernel(x0_ref, ea_ref, s_ref, a_ref, p_ref,
                          w1_ref, b1_ref, g1_ref, be1_ref,
                          w2_ref, b2_ref, g2_ref, be2_ref,
                          xnode_ref, xpool_ref,
                          x_state, x_bf, aggr):
    l = pl.program_id(0)          # layer index
    t = pl.program_id(1)          # edge-tile index
    n_layers = pl.num_programs(0)
    n_etiles = pl.num_programs(1)

    # one-time init of the running node state (resident in VMEM across the whole grid)
    @pl.when(jnp.logical_and(l == 0, t == 0))
    def _():
        x_state[...] = x0_ref[...].astype(jnp.float32)

    # start of every layer: reset the message accumulator and hoist the bf16 cast of the
    # node state out of the edge loop (used by every edge tile of this layer).
    @pl.when(t == 0)
    def _():
        aggr[...] = jnp.zeros_like(aggr)
        x_bf[...] = x_state[...].astype(jnp.bfloat16)

    # ---- message passing for this edge tile (bf16 MXU, f32 accumulate) ----
    x_src = jnp.dot(s_ref[...], x_bf[...], preferred_element_type=jnp.float32)   # [tE, D]
    msg = jnp.maximum(x_src + ea_ref[...], 0.0)                                  # relu(x_src + ea)
    aggr[...] += jnp.dot(a_ref[...], msg.astype(jnp.bfloat16),
                         preferred_element_type=jnp.float32)                     # [N, D]

    # ---- end of the edge loop: run the GINE MLP + BatchNorms for this layer ----
    @pl.when(t == n_etiles - 1)
    def _():
        x = x_state[...]
        h = x + aggr[...]                               # (1 + eps) * x + aggr, eps = 0
        inv_n = 1.0 / h.shape[0]

        # nn = Linear(D, 2D) -> BatchNorm1d(2D) -> ReLU -> Linear(2D, D)
        h1 = jnp.dot(h, w1_ref[...], preferred_element_type=jnp.float32) + b1_ref[...]
        s1 = jnp.sum(h1, axis=0, keepdims=True)          # one-pass BN stats
        q1 = jnp.sum(h1 * h1, axis=0, keepdims=True)
        mu1 = s1 * inv_n
        var1 = q1 * inv_n - mu1 * mu1
        h1 = (h1 - mu1) * jax.lax.rsqrt(var1 + BN_EPS) * g1_ref[...] + be1_ref[...]
        h1 = jnp.maximum(h1, 0.0)
        h2 = jnp.dot(h1, w2_ref[...], preferred_element_type=jnp.float32) + b2_ref[...]

        # outer BatchNorm1d(D)
        s2 = jnp.sum(h2, axis=0, keepdims=True)
        q2 = jnp.sum(h2 * h2, axis=0, keepdims=True)
        mu2 = s2 * inv_n
        var2 = q2 * inv_n - mu2 * mu2
        h2 = (h2 - mu2) * jax.lax.rsqrt(var2 + BN_EPS) * g2_ref[...] + be2_ref[...]

        # ReLU on every layer except the last (dropout p=0.0 is the identity)
        is_last = l == n_layers - 1
        x_state[...] = jnp.where(is_last, h2, jnp.maximum(h2, 0.0))

    # ---- very last grid step: emit node features + fused global_add_pool ----
    @pl.when(jnp.logical_and(t == n_etiles - 1, l == n_layers - 1))
    def _():
        xn = x_state[...]
        xnode_ref[...] = xn
        # pooling is a tiny [G, N] x [N, D] matmul: do it in f32 for exact add-pool
        xpool_ref[...] = jnp.dot(p_ref[...].astype(jnp.float32), xn,
                                 preferred_element_type=jnp.float32)


# ----------------------------- wrapper ----------------------------------------------


def molecule_encoder_forward(params, batch, x_cat, edge_index, edge_attr_cat,
                             edge_weight=None, num_graphs=2, edge_tile=EDGE_TILE):
    d = params["emb_dim"]
    d2 = 2 * d

    # AtomEncoder / BondEncoder: sum of per-categorical-feature embeddings (XLA glue).
    x = jnp.zeros((x_cat.shape[0], d), jnp.float32)
    for k, tab in enumerate(params["atom_emb"]):
        x = x + tab[x_cat[:, k]]
    ea = jnp.zeros((edge_attr_cat.shape[0], d), jnp.float32)
    for k, tab in enumerate(params["bond_emb"]):
        ea = ea + tab[edge_attr_cat[:, k]]

    n = x.shape[0]
    e = ea.shape[0]
    g = num_graphs
    src, dst = edge_index[0], edge_index[1]

    # densified graph structure (one-hot operands; 0/1 are exact in bf16)
    S = jax.nn.one_hot(src, n, dtype=jnp.float32)                  # [E, N] gather
    A = jax.nn.one_hot(dst, n, dtype=jnp.float32).T                # [N, E] scatter-add
    if edge_weight is not None:
        # TODO(synk): GINEConv edge_weight semantics assumed to scale messages.
        A = A * edge_weight[None, :]
    P = jax.nn.one_hot(batch, g, dtype=jnp.float32).T              # [G, N] add-pool

    # pad E to a multiple of edge_tile (zero S rows / A cols / ea rows contribute nothing)
    e_pad = edge_tile * pl.cdiv(e, edge_tile)
    if e_pad != e:
        S = jnp.pad(S, ((0, e_pad - e), (0, 0)))
        A = jnp.pad(A, ((0, 0), (0, e_pad - e)))
        ea = jnp.pad(ea, ((0, e_pad - e), (0, 0)))
    n_etiles = e_pad // edge_tile

    S = S.astype(jnp.bfloat16)
    A = A.astype(jnp.bfloat16)
    P = P.astype(jnp.bfloat16)

    # stack per-layer parameters so they stream over the layer grid axis
    L = len(params["layers"])
    W1 = jnp.stack([lp["w1"] for lp in params["layers"]])          # [L, D, 2D]
    B1 = jnp.stack([lp["b1"] for lp in params["layers"]])          # [L, 1, 2D]
    G1 = jnp.stack([lp["g1"] for lp in params["layers"]])
    BE1 = jnp.stack([lp["be1"] for lp in params["layers"]])
    W2 = jnp.stack([lp["w2"] for lp in params["layers"]])          # [L, 2D, D]
    B2 = jnp.stack([lp["b2"] for lp in params["layers"]])          # [L, 1, D]
    G2 = jnp.stack([lp["g2"] for lp in params["layers"]])
    BE2 = jnp.stack([lp["be2"] for lp in params["layers"]])

    in_specs = [
        pl.BlockSpec((n, d), lambda l, t: (0, 0)),                 # x0   (VMEM-resident)
        pl.BlockSpec((edge_tile, d), lambda l, t: (t, 0)),         # ea   (E-tiled)
        pl.BlockSpec((edge_tile, n), lambda l, t: (t, 0)),         # S    (E-tiled, bf16)
        pl.BlockSpec((n, edge_tile), lambda l, t: (0, t)),         # A    (E-tiled, bf16)
        pl.BlockSpec((g, n), lambda l, t: (0, 0)),                 # P    (resident, bf16)
        pl.BlockSpec((None, d, d2), lambda l, t: (l, 0, 0)),       # W1   (streamed per layer)
        pl.BlockSpec((None, 1, d2), lambda l, t: (l, 0, 0)),       # b1
        pl.BlockSpec((None, 1, d2), lambda l, t: (l, 0, 0)),       # g1
        pl.BlockSpec((None, 1, d2), lambda l, t: (l, 0, 0)),       # be1
        pl.BlockSpec((None, d2, d), lambda l, t: (l, 0, 0)),       # W2
        pl.BlockSpec((None, 1, d), lambda l, t: (l, 0, 0)),        # b2
        pl.BlockSpec((None, 1, d), lambda l, t: (l, 0, 0)),        # g2
        pl.BlockSpec((None, 1, d), lambda l, t: (l, 0, 0)),        # be2
    ]
    out_specs = (
        pl.BlockSpec((n, d), lambda l, t: (0, 0)),                 # node features
        pl.BlockSpec((g, d), lambda l, t: (0, 0)),                 # pooled graph features
    )
    out_shape = (jax.ShapeDtypeStruct((n, d), jnp.float32),
                 jax.ShapeDtypeStruct((g, d), jnp.float32))

    # explicit scoped-VMEM budget: resident blocks + double-buffered streamed blocks + slack
    f32b, bf16b = 4, 2
    resident = (n * d * f32b + g * n * bf16b            # x0, P
                + n * d * f32b + g * d * f32b           # outputs
                + 2 * n * d * f32b + n * d * bf16b)     # x_state, aggr, x_bf scratch
    streamed = 2 * (edge_tile * d * f32b                # ea
                    + edge_tile * n * bf16b             # S
                    + n * edge_tile * bf16b             # A
                    + d * d2 * f32b + d2 * d * f32b     # W1, W2
                    + 3 * d2 * f32b + 3 * d * f32b)     # BN/bias params
    vmem_limit = int(min(max(2 * (resident + streamed), 8 << 20), 48 << 20))

    xnode, xpool = pl.pallas_call(
        _fused_encoder_kernel,
        out_shape=out_shape,
        grid_spec=pltpu.PrefetchScalarGridSpec(
            num_scalar_prefetch=0,
            grid=(L, n_etiles),
            in_specs=in_specs,
            out_specs=out_specs,
            scratch_shapes=[pltpu.VMEM((n, d), jnp.float32),    # running node state
                            pltpu.VMEM((n, d), jnp.bfloat16),   # bf16 copy for MXU gather
                            pltpu.VMEM((n, d), jnp.float32)],   # message accumulator
        ),
        compiler_params=pltpu.CompilerParams(
            dimension_semantics=("arbitrary", "arbitrary"),
            vmem_limit_bytes=vmem_limit),
    )(x, ea, S, A, P, W1, B1, G1, BE1, W2, B2, G2, BE2)
    return xpool, xnode


# ----------------------------- deterministic parameter init -------------------------


def _xavier_uniform(key, fan_in, fan_out, shape):
    bound = (6.0 / (fan_in + fan_out)) ** 0.5
    return jax.random.uniform(key, shape, jnp.float32, minval=-bound, maxval=bound)


def init_params(key, emb_dim, num_gc_layers, atom_vocabs, bond_vocabs):
    keys = iter(jax.random.split(key, 4 * num_gc_layers + len(atom_vocabs) + len(bond_vocabs)))
    atom_emb = [_xavier_uniform(next(keys), v, emb_dim, (v, emb_dim)) for v in atom_vocabs]
    bond_emb = [_xavier_uniform(next(keys), v, emb_dim, (v, emb_dim)) for v in bond_vocabs]
    layers = []
    for _ in range(num_gc_layers):
        w1 = _xavier_uniform(next(keys), emb_dim, 2 * emb_dim, (emb_dim, 2 * emb_dim))
        w2 = _xavier_uniform(next(keys), 2 * emb_dim, emb_dim, (2 * emb_dim, emb_dim))
        layers.append(dict(
            w1=w1, b1=jnp.zeros((1, 2 * emb_dim), jnp.float32),
            g1=jnp.ones((1, 2 * emb_dim), jnp.float32), be1=jnp.zeros((1, 2 * emb_dim), jnp.float32),
            w2=w2, b2=jnp.zeros((1, emb_dim), jnp.float32),
            g2=jnp.ones((1, emb_dim), jnp.float32), be2=jnp.zeros((1, emb_dim), jnp.float32),
        ))
    return dict(emb_dim=emb_dim, atom_emb=atom_emb, bond_emb=bond_emb, layers=layers)


# ----------------------------- demo --------------------------------------------------

if __name__ == "__main__":
    # emb_dim=300 in the module; 128 here keeps the demo small and lane-aligned.
    # (For the real 300/600 dims, pad features to 384/640 and mask BN/pool rows.)
    EMB_DIM = 128
    NUM_LAYERS = 5        # num_gc_layers
    N_NODES = 128
    N_EDGES = 256
    N_GRAPHS = 2
    ATOM_VOCABS = (10, 5, 5)
    BOND_VOCABS = (6, 3)

    root = jax.random.PRNGKey(0)
    k_param, k_x, k_e, k_src, k_dst = jax.random.split(root, 5)

    params = init_params(k_param, EMB_DIM, NUM_LAYERS, ATOM_VOCABS, BOND_VOCABS)

    # categorical node / edge features (as consumed by AtomEncoder / BondEncoder)
    x_cat = jnp.stack(
        [jax.random.randint(jax.random.fold_in(k_x, i), (N_NODES,), 0, v)
         for i, v in enumerate(ATOM_VOCABS)], axis=1)                       # [N, 3] int32
    edge_attr_cat = jnp.stack(
        [jax.random.randint(jax.random.fold_in(k_e, i), (N_EDGES,), 0, v)
         for i, v in enumerate(BOND_VOCABS)], axis=1)                       # [E, 2] int32

    # graph membership: first half of nodes -> graph 0, second half -> graph 1;
    # edges kept within graphs.
    batch = jnp.concatenate([jnp.zeros(N_NODES // 2, jnp.int32),
                             jnp.ones(N_NODES // 2, jnp.int32)])
    half_n, half_e = N_NODES // 2, N_EDGES // 2
    src0 = jax.random.randint(k_src, (half_e,), 0, half_n)
    dst0 = jax.random.randint(k_dst, (half_e,), 0, half_n)
    src1 = jax.random.randint(jax.random.fold_in(k_src, 1), (half_e,), 0, half_n) + half_n
    dst1 = jax.random.randint(jax.random.fold_in(k_dst, 1), (half_e,), 0, half_n) + half_n
    edge_index = jnp.stack([jnp.concatenate([src0, src1]),
                            jnp.concatenate([dst0, dst1])], axis=0)         # [2, E]

    xpool, xnode = molecule_encoder_forward(
        params, batch, x_cat, edge_index, edge_attr_cat,
        edge_weight=None, num_graphs=N_GRAPHS)
    jax.block_until_ready((xpool, xnode))

    assert xpool.shape == (N_GRAPHS, EMB_DIM)
    assert xnode.shape == (N_NODES, EMB_DIM)
    assert bool(jnp.all(jnp.isfinite(xpool))) and bool(jnp.all(jnp.isfinite(xnode)))
    print("KERNEL_OK")
</pallas_src>

<mosaic_0001>
module attributes {stable_mosaic.version = 11 : i64} {
  func.func @_fused_encoder_kernel(%arg0: i32, %arg1: i32, %arg2: memref<128x128xf32, #tpu.memory_space<vmem>>, %arg3: memref<128x128xf32, #tpu.memory_space<vmem>>, %arg4: memref<128x128xbf16, #tpu.memory_space<vmem>>, %arg5: memref<128x128xbf16, #tpu.memory_space<vmem>>, %arg6: memref<2x128xbf16, #tpu.memory_space<vmem>>, %arg7: memref<1x128x256xf32, #tpu.memory_space<vmem>>, %arg8: memref<1x1x256xf32, #tpu.memory_space<vmem>>, %arg9: memref<1x1x256xf32, #tpu.memory_space<vmem>>, %arg10: memref<1x1x256xf32, #tpu.memory_space<vmem>>, %arg11: memref<1x256x128xf32, #tpu.memory_space<vmem>>, %arg12: memref<1x1x128xf32, #tpu.memory_space<vmem>>, %arg13: memref<1x1x128xf32, #tpu.memory_space<vmem>>, %arg14: memref<1x1x128xf32, #tpu.memory_space<vmem>>, %arg15: memref<128x128xf32, #tpu.memory_space<vmem>>, %arg16: memref<2x128xf32, #tpu.memory_space<vmem>>, %arg17: memref<128x128xf32, #tpu.memory_space<vmem>>, %arg18: memref<128x128xbf16, #tpu.memory_space<vmem>>, %arg19: memref<128x128xf32, #tpu.memory_space<vmem>>) attributes {dimension_semantics = [#tpu.dimension_semantics<arbitrary>, #tpu.dimension_semantics<arbitrary>], iteration_bounds = array<i64: 5, 2>, scalar_prefetch = 0 : i64, scratch_operands = 3 : i64, tpu.core_type = #tpu.core_type<tc>, window_params = [{pipeline_mode = #tpu.pipeline_mode<synchronous>, transform_indices = @transform_0, window_bounds = array<i64: 128, 128>}, {transform_indices = @transform_1, window_bounds = array<i64: 128, 128>}, {transform_indices = @transform_2, window_bounds = array<i64: 128, 128>}, {transform_indices = @transform_3, window_bounds = array<i64: 128, 128>}, {pipeline_mode = #tpu.pipeline_mode<synchronous>, transform_indices = @transform_4, window_bounds = array<i64: 2, 128>}, {transform_indices = @transform_5, window_bounds = array<i64: 1, 128, 256>}, {transform_indices = @transform_6, window_bounds = array<i64: 1, 1, 256>}, {transform_indices = @transform_7, window_bounds = array<i64: 1, 1, 256>}, {transform_indices = @transform_8, window_bounds = array<i64: 1, 1, 256>}, {transform_indices = @transform_9, window_bounds = array<i64: 1, 256, 128>}, {transform_indices = @transform_10, window_bounds = array<i64: 1, 1, 128>}, {transform_indices = @transform_11, window_bounds = array<i64: 1, 1, 128>}, {transform_indices = @transform_12, window_bounds = array<i64: 1, 1, 128>}, {pipeline_mode = #tpu.pipeline_mode<synchronous>, transform_indices = @transform_13, window_bounds = array<i64: 128, 128>}, {pipeline_mode = #tpu.pipeline_mode<synchronous>, transform_indices = @transform_14, window_bounds = array<i64: 2, 128>}]} {
    %c0_i32 = arith.constant 0 : i32
    %0 = arith.cmpi eq, %arg0, %c0_i32 : i32
    %c0_i32_0 = arith.constant 0 : i32
    %1 = arith.cmpi eq, %arg1, %c0_i32_0 : i32
    %2 = arith.andi %0, %1 : i1
    %3 = arith.extui %2 : i1 to i32
    %c0_i32_1 = arith.constant 0 : i32
    %4 = arith.cmpi ne, %3, %c0_i32_1 : i32
    scf.if %4 {
      %c0_20 = arith.constant 0 : index
      %c0_21 = arith.constant 0 : index
      %29 = vector.load %arg2[%c0_20, %c0_21] : memref<128x128xf32, #tpu.memory_space<vmem>>, vector<128x128xf32>
      %c0_22 = arith.constant 0 : index
      %c0_23 = arith.constant 0 : index
      %30 = vector.load %arg17[%c0_22, %c0_23] : memref<128x128xf32, #tpu.memory_space<vmem>>, vector<128x128xf32>
      tpu.vector_store %arg17[%c0_22, %c0_23], %29 {strides = array<i32>} : memref<128x128xf32, #tpu.memory_space<vmem>>, vector<128x128xf32>,
    } else {
    }
    %c0_i32_2 = arith.constant 0 : i32
    %5 = arith.cmpi eq, %arg1, %c0_i32_2 : i32
    %6 = arith.extui %5 : i1 to i32
    %c0_i32_3 = arith.constant 0 : i32
    %7 = arith.cmpi ne, %6, %c0_i32_3 : i32
    scf.if %7 {
      %cst_20 = arith.constant 0.000000e+00 : f32
      %29 = vector.broadcast %cst_20 : f32 to vector<128x128xf32>
      %c0_21 = arith.constant 0 : index
      %c0_22 = arith.constant 0 : index
      %30 = vector.load %arg19[%c0_21, %c0_22] : memref<128x128xf32, #tpu.memory_space<vmem>>, vector<128x128xf32>
      tpu.vector_store %arg19[%c0_21, %c0_22], %29 {strides = array<i32>} : memref<128x128xf32, #tpu.memory_space<vmem>>, vector<128x128xf32>,
      %c0_23 = arith.constant 0 : index
      %c0_24 = arith.constant 0 : index
      %31 = vector.load %arg17[%c0_23, %c0_24] : memref<128x128xf32, #tpu.memory_space<vmem>>, vector<128x128xf32>
      %32 = arith.truncf %31 : vector<128x128xf32> to vector<128x128xbf16>
      %c0_25 = arith.constant 0 : index
      %c0_26 = arith.constant 0 : index
      %33 = vector.load %arg18[%c0_25, %c0_26] : memref<128x128xbf16, #tpu.memory_space<vmem>>, vector<128x128xbf16>
      tpu.vector_store %arg18[%c0_25, %c0_26], %32 {strides = array<i32>} : memref<128x128xbf16, #tpu.memory_space<vmem>>, vector<128x128xbf16>,
    } else {
    }
    %c0 = arith.constant 0 : index
    %c0_4 = arith.constant 0 : index
    %8 = vector.load %arg4[%c0, %c0_4] : memref<128x128xbf16, #tpu.memory_space<vmem>>, vector<128x128xbf16>
    %c0_5 = arith.constant 0 : index
    %c0_6 = arith.constant 0 : index
    %9 = vector.load %arg18[%c0_5, %c0_6] : memref<128x128xbf16, #tpu.memory_space<vmem>>, vector<128x128xbf16>
    %cst = arith.constant dense<0.000000e+00> : vector<128x128xf32>
    %10 = tpu.matmul %8, %9, %cst {dimension_numbers = #tpu.dot_dimension_numbers<[1], [0], [0], [1], [0, 0, 1, 1], [], []>} : vector<128x128xbf16>, vector<128x128xbf16>, vector<128x128xf32> -> vector<128x128xf32>
    %c0_7 = arith.constant 0 : index
    %c0_8 = arith.constant 0 : index
    %11 = vector.load %arg3[%c0_7, %c0_8] : memref<128x128xf32, #tpu.memory_space<vmem>>, vector<128x128xf32>
    %12 = arith.addf %10, %11 : vector<128x128xf32>
    %cst_9 = arith.constant 0.000000e+00 : f32
    %13 = vector.broadcast %cst_9 : f32 to vector<128x128xf32>
    %14 = arith.maximumf %12, %13 : vector<128x128xf32>
    %c0_10 = arith.constant 0 : index
    %c0_11 = arith.constant 0 : index
    %15 = vector.load %arg19[%c0_10, %c0_11] : memref<128x128xf32, #tpu.memory_space<vmem>>, vector<128x128xf32>
    %c0_12 = arith.constant 0 : index
    %c0_13 = arith.constant 0 : index
    %16 = vector.load %arg5[%c0_12, %c0_13] : memref<128x128xbf16, #tpu.memory_space<vmem>>, vector<128x128xbf16>
    %17 = arith.truncf %14 : vector<128x128xf32> to vector<128x128xbf16>
    %cst_14 = arith.constant dense<0.000000e+00> : vector<128x128xf32>
    %18 = tpu.matmul %16, %17, %cst_14 {dimension_numbers = #tpu.dot_dimension_numbers<[1], [0], [0], [1], [0, 0, 1, 1], [], []>} : vector<128x128xbf16>, vector<128x128xbf16>, vector<128x128xf32> -> vector<128x128xf32>
    %19 = arith.addf %15, %18 : vector<128x128xf32>
    %c0_15 = arith.constant 0 : index
    %c0_16 = arith.constant 0 : index
    %20 = vector.load %arg19[%c0_15, %c0_16] : memref<128x128xf32, #tpu.memory_space<vmem>>, vector<128x128xf32>
    tpu.vector_store %arg19[%c0_15, %c0_16], %19 {strides = array<i32>} : memref<128x128xf32, #tpu.memory_space<vmem>>, vector<128x128xf32>,
    %c1_i32 = arith.constant 1 : i32
    %21 = arith.cmpi eq, %arg1, %c1_i32 : i32
    %22 = arith.extui %21 : i1 to i32
    %c0_i32_17 = arith.constant 0 : i32
    %23 = arith.cmpi ne, %22, %c0_i32_17 : i32
    scf.if %23 {
      %c0_20 = arith.constant 0 : index
      %c0_21 = arith.constant 0 : index
      %29 = vector.load %arg17[%c0_20, %c0_21] : memref<128x128xf32, #tpu.memory_space<vmem>>, vector<128x128xf32>
      %c0_22 = arith.constant 0 : index
      %c0_23 = arith.constant 0 : index
      %30 = vector.load %arg19[%c0_22, %c0_23] : memref<128x128xf32, #tpu.memory_space<vmem>>, vector<128x128xf32>
      %31 = arith.addf %29, %30 : vector<128x128xf32>
      %c0_24 = arith.constant 0 : index
      %c0_25 = arith.constant 0 : index
      %c0_26 = arith.constant 0 : index
      %32 = vector.load %arg7[%c0_24, %c0_25, %c0_26] : memref<1x128x256xf32, #tpu.memory_space<vmem>>, vector<1x128x256xf32>
      %33 = vector.shape_cast %32 : vector<1x128x256xf32> to vector<128x256xf32>
      %cst_27 = arith.constant dense<0.000000e+00> : vector<128x256xf32>
      %34 = tpu.matmul %31, %33, %cst_27 {dimension_numbers = #tpu.dot_dimension_numbers<[1], [0], [0], [1], [0, 0, 1, 1], [], []>} : vector<128x128xf32>, vector<128x256xf32>, vector<128x256xf32> -> vector<128x256xf32>
      %c0_28 = arith.constant 0 : index
      %c0_29 = arith.constant 0 : index
      %c0_30 = arith.constant 0 : index
      %35 = vector.load %arg8[%c0_28, %c0_29, %c0_30] : memref<1x1x256xf32, #tpu.memory_space<vmem>>, vector<1x1x256xf32>
      %36 = vector.shape_cast %35 : vector<1x1x256xf32> to vector<1x256xf32>
      %37 = vector.broadcast %36 : vector<1x256xf32> to vector<128x256xf32>
      %38 = arith.addf %34, %37 : vector<128x256xf32>
      %cst_31 = arith.constant dense<0.000000e+00> : vector<256xf32>
      %39 = vector.multi_reduction <add>, %38, %cst_31 [0] : vector<128x256xf32> to vector<256xf32>
      %40 = vector.shape_cast %39 : vector<256xf32> to vector<1x256xf32>
      %41 = arith.mulf %38, %38 : vector<128x256xf32>
      %cst_32 = arith.constant dense<0.000000e+00> : vector<256xf32>
      %42 = vector.multi_reduction <add>, %41, %cst_32 [0] : vector<128x256xf32> to vector<256xf32>
      %43 = vector.shape_cast %42 : vector<256xf32> to vector<1x256xf32>
      %cst_33 = arith.constant 7.812500e-03 : f32
      %44 = vector.broadcast %cst_33 : f32 to vector<1x256xf32>
      %45 = arith.mulf %40, %44 : vector<1x256xf32>
      %cst_34 = arith.constant 7.812500e-03 : f32
      %46 = vector.broadcast %cst_34 : f32 to vector<1x256xf32>
      %47 = arith.mulf %43, %46 : vector<1x256xf32>
      %48 = arith.mulf %45, %45 : vector<1x256xf32>
      %49 = arith.subf %47, %48 : vector<1x256xf32>
      %50 = vector.broadcast %45 : vector<1x256xf32> to vector<128x256xf32>
      %51 = arith.subf %38, %50 : vector<128x256xf32>
      %cst_35 = arith.constant 9.99999974E-6 : f32
      %52 = vector.broadcast %cst_35 : f32 to vector<1x256xf32>
      %53 = arith.addf %49, %52 : vector<1x256xf32>
      %54 = math.rsqrt %53 : vector<1x256xf32>
      %55 = vector.broadcast %54 : vector<1x256xf32> to vector<128x256xf32>
      %56 = arith.mulf %51, %55 : vector<128x256xf32>
      %c0_36 = arith.constant 0 : index
      %c0_37 = arith.constant 0 : index
      %c0_38 = arith.constant 0 : index
      %57 = vector.load %arg9[%c0_36, %c0_37, %c0_38] : memref<1x1x256xf32, #tpu.memory_space<vmem>>, vector<1x1x256xf32>
      %58 = vector.shape_cast %57 : vector<1x1x256xf32> to vector<1x256xf32>
      %59 = vector.broadcast %58 : vector<1x256xf32> to vector<128x256xf32>
      %60 = arith.mulf %56, %59 : vector<128x256xf32>
      %c0_39 = arith.constant 0 : index
      %c0_40 = arith.constant 0 : index
      %c0_41 = arith.constant 0 : index
      %61 = vector.load %arg10[%c0_39, %c0_40, %c0_41] : memref<1x1x256xf32, #tpu.memory_space<vmem>>, vector<1x1x256xf32>
      %62 = vector.shape_cast %61 : vector<1x1x256xf32> to vector<1x256xf32>
      %63 = vector.broadcast %62 : vector<1x256xf32> to vector<128x256xf32>
      %64 = arith.addf %60, %63 : vector<128x256xf32>
      %cst_42 = arith.constant 0.000000e+00 : f32
      %65 = vector.broadcast %cst_42 : f32 to vector<128x256xf32>
      %66 = arith.maximumf %64, %65 : vector<128x256xf32>
      %c0_43 = arith.constant 0 : index
      %c0_44 = arith.constant 0 : index
      %c0_45 = arith.constant 0 : index
      %67 = vector.load %arg11[%c0_43, %c0_44, %c0_45] : memref<1x256x128xf32, #tpu.memory_space<vmem>>, vector<1x256x128xf32>
      %68 = vector.shape_cast %67 : vector<1x256x128xf32> to vector<256x128xf32>
      %cst_46 = arith.constant dense<0.000000e+00> : vector<128x128xf32>
      %69 = tpu.matmul %66, %68, %cst_46 {dimension_numbers = #tpu.dot_dimension_numbers<[1], [0], [0], [1], [0, 0, 1, 1], [], []>} : vector<128x256xf32>, vector<256x128xf32>, vector<128x128xf32> -> vector<128x128xf32>
      %c0_47 = arith.constant 0 : index
      %c0_48 = arith.constant 0 : index
      %c0_49 = arith.constant 0 : index
      %70 = vector.load %arg12[%c0_47, %c0_48, %c0_49] : memref<1x1x128xf32, #tpu.memory_space<vmem>>, vector<1x1x128xf32>
      %71 = vector.shape_cast %70 : vector<1x1x128xf32> to vector<1x128xf32>
      %72 = vector.broadcast %71 : vector<1x128xf32> to vector<128x128xf32>
      %73 = arith.addf %69, %72 : vector<128x128xf32>
      %cst_50 = arith.constant dense<0.000000e+00> : vector<128xf32>
      %74 = vector.multi_reduction <add>, %73, %cst_50 [0] : vector<128x128xf32> to vector<128xf32>
      %75 = vector.shape_cast %74 : vector<128xf32> to vector<1x128xf32>
      %76 = arith.mulf %73, %73 : vector<128x128xf32>
      %cst_51 = arith.constant dense<0.000000e+00> : vector<128xf32>
      %77 = vector.multi_reduction <add>, %76, %cst_51 [0] : vector<128x128xf32> to vector<128xf32>
      %78 = vector.shape_cast %77 : vector<128xf32> to vector<1x128xf32>
      %cst_52 = arith.constant 7.812500e-03 : f32
      %79 = vector.broadcast %cst_52 : f32 to vector<1x128xf32>
      %80 = arith.mulf %75, %79 : vector<1x128xf32>
      %cst_53 = arith.constant 7.812500e-03 : f32
      %81 = vector.broadcast %cst_53 : f32 to vector<1x128xf32>
      %82 = arith.mulf %78, %81 : vector<1x128xf32>
      %83 = arith.mulf %80, %80 : vector<1x128xf32>
      %84 = arith.subf %82, %83 : vector<1x128xf32>
      %85 = vector.broadcast %80 : vector<1x128xf32> to vector<128x128xf32>
      %86 = arith.subf %73, %85 : vector<128x128xf32>
      %cst_54 = arith.constant 9.99999974E-6 : f32
      %87 = vector.broadcast %cst_54 : f32 to vector<1x128xf32>
      %88 = arith.addf %84, %87 : vector<1x128xf32>
      %89 = math.rsqrt %88 : vector<1x128xf32>
      %90 = vector.broadcast %89 : vector<1x128xf32> to vector<128x128xf32>
      %91 = arith.mulf %86, %90 : vector<128x128xf32>
      %c0_55 = arith.constant 0 : index
      %c0_56 = arith.constant 0 : index
      %c0_57 = arith.constant 0 : index
      %92 = vector.load %arg13[%c0_55, %c0_56, %c0_57] : memref<1x1x128xf32, #tpu.memory_space<vmem>>, vector<1x1x128xf32>
      %93 = vector.shape_cast %92 : vector<1x1x128xf32> to vector<1x128xf32>
      %94 = vector.broadcast %93 : vector<1x128xf32> to vector<128x128xf32>
      %95 = arith.mulf %91, %94 : vector<128x128xf32>
      %c0_58 = arith.constant 0 : index
      %c0_59 = arith.constant 0 : index
      %c0_60 = arith.constant 0 : index
      %96 = vector.load %arg14[%c0_58, %c0_59, %c0_60] : memref<1x1x128xf32, #tpu.memory_space<vmem>>, vector<1x1x128xf32>
      %97 = vector.shape_cast %96 : vector<1x1x128xf32> to vector<1x128xf32>
      %98 = vector.broadcast %97 : vector<1x128xf32> to vector<128x128xf32>
      %99 = arith.addf %95, %98 : vector<128x128xf32>
      %c4_i32_61 = arith.constant 4 : i32
      %100 = arith.cmpi eq, %arg0, %c4_i32_61 : i32
      %cst_62 = arith.constant 0.000000e+00 : f32
      %101 = vector.broadcast %cst_62 : f32 to vector<128x128xf32>
      %102 = arith.maximumf %99, %101 : vector<128x128xf32>
      %103 = arith.select %100, %99, %102 : vector<128x128xf32>
      %c0_63 = arith.constant 0 : index
      %c0_64 = arith.constant 0 : index
      %104 = vector.load %arg17[%c0_63, %c0_64] : memref<128x128xf32, #tpu.memory_space<vmem>>, vector<128x128xf32>
      tpu.vector_store %arg17[%c0_63, %c0_64], %103 {strides = array<i32>} : memref<128x128xf32, #tpu.memory_space<vmem>>, vector<128x128xf32>,
    } else {
    }
    %c1_i32_18 = arith.constant 1 : i32
    %24 = arith.cmpi eq, %arg1, %c1_i32_18 : i32
    %c4_i32 = arith.constant 4 : i32
    %25 = arith.cmpi eq, %arg0, %c4_i32 : i32
    %26 = arith.andi %24, %25 : i1
    %27 = arith.extui %26 : i1 to i32
    %c0_i32_19 = arith.constant 0 : i32
    %28 = arith.cmpi ne, %27, %c0_i32_19 : i32
    scf.if %28 {
      %c0_20 = arith.constant 0 : index
      %c0_21 = arith.constant 0 : index
      %29 = vector.load %arg17[%c0_20, %c0_21] : memref<128x128xf32, #tpu.memory_space<vmem>>, vector<128x128xf32>
      %c0_22 = arith.constant 0 : index
      %c0_23 = arith.constant 0 : index
      %30 = vector.load %arg15[%c0_22, %c0_23] : memref<128x128xf32, #tpu.memory_space<vmem>>, vector<128x128xf32>
      tpu.vector_store %arg15[%c0_22, %c0_23], %29 {strides = array<i32>} : memref<128x128xf32, #tpu.memory_space<vmem>>, vector<128x128xf32>,
      %c0_24 = arith.constant 0 : index
      %c0_25 = arith.constant 0 : index
      %31 = vector.load %arg6[%c0_24, %c0_25] : memref<2x128xbf16, #tpu.memory_space<vmem>>, vector<2x128xbf16>
      %32 = arith.extf %31 : vector<2x128xbf16> to vector<2x128xf32>
      %cst_26 = arith.constant dense<0.000000e+00> : vector<2x128xf32>
      %33 = tpu.matmul %32, %29, %cst_26 {dimension_numbers = #tpu.dot_dimension_numbers<[1], [0], [0], [1], [0, 0, 1, 1], [], []>} : vector<2x128xf32>, vector<128x128xf32>, vector<2x128xf32> -> vector<2x128xf32>
      %c0_27 = arith.constant 0 : index
      %c0_28 = arith.constant 0 : index
      %34 = vector.load %arg16[%c0_27, %c0_28] : memref<2x128xf32, #tpu.memory_space<vmem>>, vector<2x128xf32>
      tpu.vector_store %arg16[%c0_27, %c0_28], %33 {strides = array<i32>} : memref<2x128xf32, #tpu.memory_space<vmem>>, vector<2x128xf32>,
    } else {
    }
    return
  }
  func.func @transform_0(%arg0: i32, %arg1: i32) -> (i32, i32) {
    %c0_i32 = arith.constant 0 : i32
    %c0_i32_0 = arith.constant 0 : i32
    %c0_i32_1 = arith.constant 0 : i32
    return %c0_i32, %c0_i32_0 : i32, i32
  }
  func.func @transform_1(%arg0: i32, %arg1: i32) -> (i32, i32) {
    %c0_i32 = arith.constant 0 : i32
    %c0_i32_0 = arith.constant 0 : i32
    return %arg1, %c0_i32 : i32, i32
  }
  func.func @transform_2(%arg0: i32, %arg1: i32) -> (i32, i32) {
    %c0_i32 = arith.constant 0 : i32
    %c0_i32_0 = arith.constant 0 : i32
    return %arg1, %c0_i32 : i32, i32
  }
  func.func @transform_3(%arg0: i32, %arg1: i32) -> (i32, i32) {
    %c0_i32 = arith.constant 0 : i32
    %c0_i32_0 = arith.constant 0 : i32
    return %c0_i32, %arg1 : i32, i32
  }
  func.func @transform_4(%arg0: i32, %arg1: i32) -> (i32, i32) {
    %c0_i32 = arith.constant 0 : i32
    %c0_i32_0 = arith.constant 0 : i32
    %c0_i32_1 = arith.constant 0 : i32
    return %c0_i32, %c0_i32_0 : i32, i32
  }
  func.func @transform_5(%arg0: i32, %arg1: i32) -> (i32, i32, i32) {
    %c0_i32 = arith.constant 0 : i32
    %c0_i32_0 = arith.constant 0 : i32
    %c0_i32_1 = arith.constant 0 : i32
    return %arg0, %c0_i32, %c0_i32_0 : i32, i32, i32
  }
  func.func @transform_6(%arg0: i32, %arg1: i32) -> (i32, i32, i32) {
    %c0_i32 = arith.constant 0 : i32
    %c0_i32_0 = arith.constant 0 : i32
    %c0_i32_1 = arith.constant 0 : i32
    return %arg0, %c0_i32, %c0_i32_0 : i32, i32, i32
  }
  func.func @transform_7(%arg0: i32, %arg1: i32) -> (i32, i32, i32) {
    %c0_i32 = arith.constant 0 : i32
    %c0_i32_0 = arith.constant 0 : i32
    %c0_i32_1 = arith.constant 0 : i32
    return %arg0, %c0_i32, %c0_i32_0 : i32, i32, i32
  }
  func.func @transform_8(%arg0: i32, %arg1: i32) -> (i32, i32, i32) {
    %c0_i32 = arith.constant 0 : i32
    %c0_i32_0 = arith.constant 0 : i32
    %c0_i32_1 = arith.constant 0 : i32
    return %arg0, %c0_i32, %c0_i32_0 : i32, i32, i32
  }
  func.func @transform_9(%arg0: i32, %arg1: i32) -> (i32, i32, i32) {
    %c0_i32 = arith.constant 0 : i32
    %c0_i32_0 = arith.constant 0 : i32
    %c0_i32_1 = arith.constant 0 : i32
    return %arg0, %c0_i32, %c0_i32_0 : i32, i32, i32
  }
  func.func @transform_10(%arg0: i32, %arg1: i32) -> (i32, i32, i32) {
    %c0_i32 = arith.constant 0 : i32
    %c0_i32_0 = arith.constant 0 : i32
    %c0_i32_1 = arith.constant 0 : i32
    return %arg0, %c0_i32, %c0_i32_0 : i32, i32, i32
  }
  func.func @transform_11(%arg0: i32, %arg1: i32) -> (i32, i32, i32) {
    %c0_i32 = arith.constant 0 : i32
    %c0_i32_0 = arith.constant 0 : i32
    %c0_i32_1 = arith.constant 0 : i32
    return %arg0, %c0_i32, %c0_i32_0 : i32, i32, i32
  }
  func.func @transform_12(%arg0: i32, %arg1: i32) -> (i32, i32, i32) {
    %c0_i32 = arith.constant 0 : i32
    %c0_i32_0 = arith.constant 0 : i32
    %c0_i32_1 = arith.constant 0 : i32
    return %arg0, %c0_i32, %c0_i32_0 : i32, i32, i32
  }
  func.func @transform_13(%arg0: i32, %arg1: i32) -> (i32, i32) {
    %c0_i32 = arith.constant 0 : i32
    %c0_i32_0 = arith.constant 0 : i32
    %c0_i32_1 = arith.constant 0 : i32
    return %c0_i32, %c0_i32_0 : i32, i32
  }
  func.func @transform_14(%arg0: i32, %arg1: i32) -> (i32, i32) {
    %c0_i32 = arith.constant 0 : i32
    %c0_i32_0 = arith.constant 0 : i32
    %c0_i32_1 = arith.constant 0 : i32
    return %c0_i32, %c0_i32_0 : i32, i32
  }
}

</mosaic_0001>

<llo_original>
// kernel: tpu_custom_call.1
$region0: #{tpu_custom_call.1}
  #allocation0 [shape = 'u32[]', space=smem, size = 0x4, offset = 0x4, fixed_abs, tag = 'smem constant byte address 0x4 - core index']
  #allocation1 [shape = 'u32[72,128]{1,0:T(1,128)}', space=vmem, size = 0x9000, scoped, tag = 'internal scratch']
  #allocation2 [shape = 'f32[128,128]{1,0:T(8,128)}', space=vmem, size = 0x10000, scoped, tag = 'scratch operand']
  #allocation3 [shape = 'bf16[128,128]{1,0:T(8,128)(2,1)}', space=vmem, size = 0x8000, scoped, tag = 'scratch operand']
  #allocation4 [shape = 'f32[128,128]{1,0:T(8,128)}', space=vmem, size = 0x10000, scoped, tag = 'scratch operand']
  %s0 = inlined_call_operand.hbm [shape: f32[128,128], index: 0, kind: input, shape index: {}]
  %s1 = inlined_call_operand.hbm [shape: f32[256,128], index: 1, kind: input, shape index: {}]
  %s2 = inlined_call_operand.hbm [shape: bf16[256,128], index: 2, kind: input, shape index: {}]
  %s3 = inlined_call_operand.hbm [shape: bf16[128,256], index: 3, kind: input, shape index: {}]
  %s4 = inlined_call_operand.hbm [shape: bf16[2,128], index: 4, kind: input, shape index: {}]
  %s5 = inlined_call_operand.hbm [shape: f32[5,128,256], index: 5, kind: input, shape index: {}]
  %s6 = inlined_call_operand.hbm [shape: f32[5,1,256], index: 6, kind: input, shape index: {}]
  %s7 = inlined_call_operand.hbm [shape: f32[5,1,256], index: 7, kind: input, shape index: {}]
  %s8 = inlined_call_operand.hbm [shape: f32[5,1,256], index: 8, kind: input, shape index: {}]
  %s9 = inlined_call_operand.hbm [shape: f32[5,256,128], index: 9, kind: input, shape index: {}]
  %s10 = inlined_call_operand.vmem [shape: f32[5,1,128], index: 10, kind: input, shape index: {}]
  %s11 = inlined_call_operand.vmem [shape: f32[5,1,128], index: 11, kind: input, shape index: {}]
  %s12 = inlined_call_operand.hbm [shape: f32[5,1,128], index: 12, kind: input, shape index: {}]
  %s13 = inlined_call_operand.hbm [shape: f32[128,128], index: 13, kind: output, shape index: {0}]
  %s14 = inlined_call_operand.hbm [shape: f32[2,128], index: 14, kind: output, shape index: {1}]
  %15 = xla_tuple %s13, %s14
  %s16 = sld [smem:[#allocation0]]
  $region153: #{tpu_custom_call.1} parent=0
    _
  %s18 = ssub.s32 1, %s16
  %s19 = scalar_select 0, %s18, %s16
  $region1: #{tpu_custom_call.1} parent=0
    #allocation5 [shape = 'u8[65536]{0}', space=vmem, size = 0x10000, scoped, tag = 'input window, operand 0, single buffered']
    #allocation6 [shape = 's32[2]{0}', space=sflag, size = 0x8, scoped, tag = 'scoped memory for tpu_custom_call.1']
    #allocation7 [shape = 's32[2]{0}', space=sflag, size = 0x8, scoped, tag = 'scoped memory for tpu_custom_call.1']
    #allocation8 [shape = 'u8[131072]{0}', space=vmem, size = 0x20000, scoped, tag = 'input window, operand 1']
    #allocation9 [shape = 's32[2]{0}', space=sflag, size = 0x8, scoped, tag = 'scoped memory for tpu_custom_call.1']
    #allocation10 [shape = 'u8[65536]{0}', space=vmem, size = 0x10000, scoped, tag = 'input window, operand 2']
    #allocation11 [shape = 'u8[65536]{0}', space=vmem, size = 0x10000, scoped, tag = 'input window, operand 3']
    #allocation12 [shape = 's32[2]{0}', space=sflag, size = 0x8, scoped, tag = 'scoped memory for tpu_custom_call.1']
    #allocation13 [shape = 'u8[512]{0}', space=vmem, size = 0x400, scoped, tag = 'input window, operand 4, single buffered']
    #allocation14 [shape = 'u8[262144]{0}', space=vmem, size = 0x40000, scoped, tag = 'input window, operand 5']
    #allocation15 [shape = 's32[2]{0}', space=sflag, size = 0x8, scoped, tag = 'scoped memory for tpu_custom_call.1']
    #allocation16 [shape = 'u8[2048]{0}', space=vmem, size = 0x800, scoped, tag = 'input window, operand 6']
    #allocation17 [shape = 'u8[2048]{0}', space=vmem, size = 0x800, scoped, tag = 'input window, operand 7']
    #allocation18 [shape = 's32[2]{0}', space=sflag, size = 0x8, scoped, tag = 'scoped memory for tpu_custom_call.1']
    #allocation19 [shape = 'u8[2048]{0}', space=vmem, size = 0x800, scoped, tag = 'input window, operand 8']
    #allocation20 [shape = 'u8[262144]{0}', space=vmem, size = 0x40000, scoped, tag = 'input window, operand 9']
    #allocation21 [shape = 's32[2]{0}', space=sflag, size = 0x8, scoped, tag = 'scoped memory for tpu_custom_call.1']
    #allocation22 [shape = 'u8[1024]{0}', space=vmem, size = 0x400, scoped, tag = 'input window, operand 12']
    #allocation23 [shape = 'u8[65536]{0}', space=vmem, size = 0x10000, scoped, tag = 'output window, operand 0, single buffered']
    #allocation24 [shape = 'u8[1024]{0}', space=vmem, size = 0x400, scoped, tag = 'output window, operand 1, single buffered']
    #allocation25 [shape = 's32[1]{0}', space=sflag, size = 0x4, scoped, tag = 'scoped memory for tpu_custom_call.1']
    %20 = vsyncpa [#allocation6], 0
    %21 = vsyncpa [#allocation9], 0
    %s22 = scalar_lea.sflag [#allocation9], 1
    %23 = vsyncpa %s22, 0
    %24 = vsyncpa [#allocation12], 0
    %s25 = scalar_lea.sflag [#allocation12], 1
    %26 = vsyncpa %s25, 0
    %27 = vsyncpa [#allocation15], 0
    %s28 = scalar_lea.sflag [#allocation15], 1
    %29 = vsyncpa %s28, 0
    %30 = vsyncpa [#allocation18], 0
    %s31 = scalar_lea.sflag [#allocation18], 1
    %32 = vsyncpa %s31, 0
    %33 = vsyncpa [#allocation21], 0
    %s34 = scalar_lea.sflag [#allocation21], 1
    %35 = vsyncpa %s34, 0
    %36 = vsyncpa [#allocation7], 0
    %37 = vsyncpa [#allocation25], 0
    loop: start=0, step=1, limit=12
    $region2: #{tpu_custom_call.1} parent=1 // loop_pre_header
      _
    $region3: #{tpu_custom_call.1} parent=1 // loop_header
      %s39 = sphi 0, %s43
      %p40 = scmp.ge.s32.totalorder %s39, 12
      %s46 = sphi 0, %s58
      %s47 = sphi 0, %s54
      %s48 = sphi 0, %s46
      %s49 = sphi 0, %s47
      %s50 = sphi 0, %s48
      %s51 = sphi 0, %s49
      %s59 = sphi 0, %s59
      %s61 = sphi 0, %s59
      %s62 = sphi 0, %s61
      %s76 = sphi 0, %s62
      %s82 = sphi 0, %s84
      %s85 = sphi 0, %s82
      %s86 = sphi 0, %s85
      %s102 = sphi 0, %s86
      %s108 = sphi 0, %s110
      %s111 = sphi 0, %s108
      %s112 = sphi 0, %s111
      %s128 = sphi 0, %s112
      %s134 = sphi 0, %s136
      %s137 = sphi 0, %s134
      %s138 = sphi 0, %s137
      %s154 = sphi 0, %s138
      %s158 = sphi 0, %s158
      %s160 = sphi 0, %s158
      %s161 = sphi 0, %s160
      %s175 = sphi 0, %s161
      %s181 = sphi 0, %s183
      %s184 = sphi 0, %s181
      %s185 = sphi 0, %s184
      %s201 = sphi 0, %s185
      %s207 = sphi 0, %s209
      %s210 = sphi 0, %s207
      %s211 = sphi 0, %s210
      %s227 = sphi 0, %s211
      %s233 = sphi 0, %s235
      %s236 = sphi 0, %s233
      %s237 = sphi 0, %s236
      %s253 = sphi 0, %s237
      %s259 = sphi 0, %s261
      %s262 = sphi 0, %s259
      %s263 = sphi 0, %s262
      %s279 = sphi 0, %s263
      %s285 = sphi 0, %s287
      %s288 = sphi 0, %s285
      %s289 = sphi 0, %s288
      %s305 = sphi 0, %s289
      %s311 = sphi 0, %s313
      %s314 = sphi 0, %s311
      %s315 = sphi 0, %s314
      %s331 = sphi 0, %s315
      %s337 = sphi 0, %s339
      %s340 = sphi 0, %s337
      %s341 = sphi 0, %s340
      %s357 = sphi 0, %s341
      %s363 = sphi 0, %s365
      %s366 = sphi 0, %s363
      %s367 = sphi 0, %s366
      %s383 = sphi 0, %s367
      %s387 = sphi 0, %s387
      %s389 = sphi 0, %s387
      %s390 = sphi 0, %s389
      %s404 = sphi 0, %s390
      %s408 = sphi 0, %s408
      %s410 = sphi 0, %s408
      %s411 = sphi 0, %s410
      %s425 = sphi 0, %s411
    $region4: #{tpu_custom_call.1} parent=1 // loop_header_branch
      %42 = sbr.rel (%p40) target = $region8
    $region5: #{tpu_custom_call.1} parent=1 // loop_body
      %s44 = ssub.s32 %s39, 1
      %s45 = ssub.s32 %s39, 2
      %s52 = sadd.s32 1, %s47
      %p53 = scmp.ge.s32.totalorder %s52, 2
      %s54 = scalar_select %p53, 0, %s52
      %s55 = sadd.s32 1, %s46
      %s56 = scalar_select %p53, %s55, %s46
      %p57 = scmp.ge.s32.totalorder %s56, 5
      %s58 = scalar_select %p57, 0, %s56
      %s60 = sadd.s32 %s59, 1
      %p63 = scmp.eq.s32.totalorder %s39, 9
      %p64 = scmp.ne.s32.totalorder %s59, %s61
      %p65 = scmp.eq.s32.totalorder %s39, 0
      %p66 = por %p64, %p65
      %p67 = scmp.ne.s32.totalorder %s59, %s61
      %p68 = scmp.eq.s32.totalorder %s44, 9
      %p69 = por %p67, %p68
      %p70 = scmp.ne.s32.totalorder %s61, %s62
      %p71 = scmp.eq.s32.totalorder %s44, 0
      %p72 = por %p70, %p71
      %p73 = scmp.ne.s32.totalorder %s61, %s62
      %p74 = scmp.eq.s32.totalorder %s45, 9
      %p75 = por %p73, %p74
      %p77 = scmp.ne.s32.totalorder %s62, %s76
      %p78 = scmp.eq.s32.totalorder %s45, 0
      %p79 = por %p77, %p78
      %s80 = ssub.s32 %s47, %s54
      %p81 = scmp.eq.s32.totalorder %s80, 0
      %s83 = sadd.s32 %s82, 1
      %s84 = scalar_select %p81, %s82, %s83
      %p87 = pneg %p81
      %p88 = scmp.eq.s32.totalorder %s39, 9
      %p89 = por %p87, %p88
      %p90 = scmp.ne.s32.totalorder %s82, %s85
      %p91 = scmp.eq.s32.totalorder %s39, 0
      %p92 = por %p90, %p91
      %p93 = scmp.ne.s32.totalorder %s82, %s85
      %p94 = scmp.eq.s32.totalorder %s44, 9
      %p95 = por %p93, %p94
      %p96 = scmp.ne.s32.totalorder %s85, %s86
      %p97 = scmp.eq.s32.totalorder %s44, 0
      %p98 = por %p96, %p97
      %p99 = scmp.ne.s32.totalorder %s85, %s86
      %p100 = scmp.eq.s32.totalorder %s45, 9
      %p101 = por %p99, %p100
      %p103 = scmp.ne.s32.totalorder %s86, %s102
      %p104 = scmp.eq.s32.totalorder %s45, 0
      %p105 = por %p103, %p104
      %s106 = ssub.s32 %s47, %s54
      %p107 = scmp.eq.s32.totalorder %s106, 0
      %s109 = sadd.s32 %s108, 1
      %s110 = scalar_select %p107, %s108, %s109
      %p113 = pneg %p107
      %p114 = scmp.eq.s32.totalorder %s39, 9
      %p115 = por %p113, %p114
      %p116 = scmp.ne.s32.totalorder %s108, %s111
      %p117 = scmp.eq.s32.totalorder %s39, 0
      %p118 = por %p116, %p117
      %p119 = scmp.ne.s32.totalorder %s108, %s111
      %p120 = scmp.eq.s32.totalorder %s44, 9
      %p121 = por %p119, %p120
      %p122 = scmp.ne.s32.totalorder %s111, %s112
      %p123 = scmp.eq.s32.totalorder %s44, 0
      %p124 = por %p122, %p123
      %p125 = scmp.ne.s32.totalorder %s111, %s112
      %p126 = scmp.eq.s32.totalorder %s45, 9
      %p127 = por %p125, %p126
      %p129 = scmp.ne.s32.totalorder %s112, %s128
      %p130 = scmp.eq.s32.totalorder %s45, 0
      %p131 = por %p129, %p130
      %s132 = ssub.s32 %s47, %s54
      %p133 = scmp.eq.s32.totalorder %s132, 0
      %s135 = sadd.s32 %s134, 1
      %s136 = scalar_select %p133, %s134, %s135
      %p139 = pneg %p133
      %p140 = scmp.eq.s32.totalorder %s39, 9
      %p141 = por %p139, %p140
      %p142 = scmp.ne.s32.totalorder %s134, %s137
      %p143 = scmp.eq.s32.totalorder %s39, 0
      %p144 = por %p142, %p143
      %p145 = scmp.ne.s32.totalorder %s134, %s137
      %p146 = scmp.eq.s32.totalorder %s44, 9
      %p147 = por %p145, %p146
      %p148 = scmp.ne.s32.totalorder %s137, %s138
      %p149 = scmp.eq.s32.totalorder %s44, 0
      %p150 = por %p148, %p149
      %p151 = scmp.ne.s32.totalorder %s137, %s138
      %p152 = scmp.eq.s32.totalorder %s45, 9
      %p153 = por %p151, %p152
      %p155 = scmp.ne.s32.totalorder %s138, %s154
      %p156 = scmp.eq.s32.totalorder %s45, 0
      %p157 = por %p155, %p156
      %s159 = sadd.s32 %s158, 1
      %p162 = scmp.eq.s32.totalorder %s39, 9
      %p163 = scmp.ne.s32.totalorder %s158, %s160
      %p164 = scmp.eq.s32.totalorder %s39, 0
      %p165 = por %p163, %p164
      %p166 = scmp.ne.s32.totalorder %s158, %s160
      %p167 = scmp.eq.s32.totalorder %s44, 9
      %p168 = por %p166, %p167
      %p169 = scmp.ne.s32.totalorder %s160, %s161
      %p170 = scmp.eq.s32.totalorder %s44, 0
      %p171 = por %p169, %p170
      %p172 = scmp.ne.s32.totalorder %s160, %s161
      %p173 = scmp.eq.s32.totalorder %s45, 9
      %p174 = por %p172, %p173
      %p176 = scmp.ne.s32.totalorder %s161, %s175
      %p177 = scmp.eq.s32.totalorder %s45, 0
      %p178 = por %p176, %p177
      %s179 = ssub.s32 %s46, %s58
      %p180 = scmp.eq.s32.totalorder %s179, 0
      %s182 = sadd.s32 %s181, 1
      %s183 = scalar_select %p180, %s181, %s182
      %p186 = pneg %p180
      %p187 = scmp.eq.s32.totalorder %s39, 9
      %p188 = por %p186, %p187
      %p189 = scmp.ne.s32.totalorder %s181, %s184
      %p190 = scmp.eq.s32.totalorder %s39, 0
      %p191 = por %p189, %p190
      %p192 = scmp.ne.s32.totalorder %s181, %s184
      %p193 = scmp.eq.s32.totalorder %s44, 9
      %p194 = por %p192, %p193
      %p195 = scmp.ne.s32.totalorder %s184, %s185
      %p196 = scmp.eq.s32.totalorder %s44, 0
      %p197 = por %p195, %p196
      %p198 = scmp.ne.s32.totalorder %s184, %s185
      %p199 = scmp.eq.s32.totalorder %s45, 9
      %p200 = por %p198, %p199
      %p202 = scmp.ne.s32.totalorder %s185, %s201
      %p203 = scmp.eq.s32.totalorder %s45, 0
      %p204 = por %p202, %p203
      %s205 = ssub.s32 %s46, %s58
      %p206 = scmp.eq.s32.totalorder %s205, 0
      %s208 = sadd.s32 %s207, 1
      %s209 = scalar_select %p206, %s207, %s208
      %p212 = pneg %p206
      %p213 = scmp.eq.s32.totalorder %s39, 9
      %p214 = por %p212, %p213
      %p215 = scmp.ne.s32.totalorder %s207, %s210
      %p216 = scmp.eq.s32.totalorder %s39, 0
      %p217 = por %p215, %p216
      %p218 = scmp.ne.s32.totalorder %s207, %s210
      %p219 = scmp.eq.s32.totalorder %s44, 9
      %p220 = por %p218, %p219
      %p221 = scmp.ne.s32.totalorder %s210, %s211
      %p222 = scmp.eq.s32.totalorder %s44, 0
      %p223 = por %p221, %p222
      %p224 = scmp.ne.s32.totalorder %s210, %s211
      %p225 = scmp.eq.s32.totalorder %s45, 9
      %p226 = por %p224, %p225
      %p228 = scmp.ne.s32.totalorder %s211, %s227
      %p229 = scmp.eq.s32.totalorder %s45, 0
      %p230 = por %p228, %p229
      %s231 = ssub.s32 %s46, %s58
      %p232 = scmp.eq.s32.totalorder %s231, 0
      %s234 = sadd.s32 %s233, 1
      %s235 = scalar_select %p232, %s233, %s234
      %p238 = pneg %p232
      %p239 = scmp.eq.s32.totalorder %s39, 9
      %p240 = por %p238, %p239
      %p241 = scmp.ne.s32.totalorder %s233, %s236
      %p242 = scmp.eq.s32.totalorder %s39, 0
      %p243 = por %p241, %p242
      %p244 = scmp.ne.s32.totalorder %s233, %s236
      %p245 = scmp.eq.s32.totalorder %s44, 9
      %p246 = por %p244, %p245
      %p247 = scmp.ne.s32.totalorder %s236, %s237
      %p248 = scmp.eq.s32.totalorder %s44, 0
      %p249 = por %p247, %p248
      %p250 = scmp.ne.s32.totalorder %s236, %s237
      %p251 = scmp.eq.s32.totalorder %s45, 9
      %p252 = por %p250, %p251
      %p254 = scmp.ne.s32.totalorder %s237, %s253
      %p255 = scmp.eq.s32.totalorder %s45, 0
      %p256 = por %p254, %p255
      %s257 = ssub.s32 %s46, %s58
      %p258 = scmp.eq.s32.totalorder %s257, 0
      %s260 = sadd.s32 %s259, 1
      %s261 = scalar_select %p258, %s259, %s260
      %p264 = pneg %p258
      %p265 = scmp.eq.s32.totalorder %s39, 9
      %p266 = por %p264, %p265
      %p267 = scmp.ne.s32.totalorder %s259, %s262
      %p268 = scmp.eq.s32.totalorder %s39, 0
      %p269 = por %p267, %p268
      %p270 = scmp.ne.s32.totalorder %s259, %s262
      %p271 = scmp.eq.s32.totalorder %s44, 9
      %p272 = por %p270, %p271
      %p273 = scmp.ne.s32.totalorder %s262, %s263
      %p274 = scmp.eq.s32.totalorder %s44, 0
      %p275 = por %p273, %p274
      %p276 = scmp.ne.s32.totalorder %s262, %s263
      %p277 = scmp.eq.s32.totalorder %s45, 9
      %p278 = por %p276, %p277
      %p280 = scmp.ne.s32.totalorder %s263, %s279
      %p281 = scmp.eq.s32.totalorder %s45, 0
      %p282 = por %p280, %p281
      %s283 = ssub.s32 %s46, %s58
      %p284 = scmp.eq.s32.totalorder %s283, 0
      %s286 = sadd.s32 %s285, 1
      %s287 = scalar_select %p284, %s285, %s286
      %p290 = pneg %p284
      %p291 = scmp.eq.s32.totalorder %s39, 9
      %p292 = por %p290, %p291
      %p293 = scmp.ne.s32.totalorder %s285, %s288
      %p294 = scmp.eq.s32.totalorder %s39, 0
      %p295 = por %p293, %p294
      %p296 = scmp.ne.s32.totalorder %s285, %s288
      %p297 = scmp.eq.s32.totalorder %s44, 9
      %p298 = por %p296, %p297
      %p299 = scmp.ne.s32.totalorder %s288, %s289
      %p300 = scmp.eq.s32.totalorder %s44, 0
      %p301 = por %p299, %p300
      %p302 = scmp.ne.s32.totalorder %s288, %s289
      %p303 = scmp.eq.s32.totalorder %s45, 9
      %p304 = por %p302, %p303
      %p306 = scmp.ne.s32.totalorder %s289, %s305
      %p307 = scmp.eq.s32.totalorder %s45, 0
      %p308 = por %p306, %p307
      %s309 = ssub.s32 %s46, %s58
      %p310 = scmp.eq.s32.totalorder %s309, 0
      %s312 = sadd.s32 %s311, 1
      %s313 = scalar_select %p310, %s311, %s312
      %p316 = pneg %p310
      %p317 = scmp.eq.s32.totalorder %s39, 9
      %p318 = por %p316, %p317
      %p319 = scmp.ne.s32.totalorder %s311, %s314
      %p320 = scmp.eq.s32.totalorder %s39, 0
      %p321 = por %p319, %p320
      %p322 = scmp.ne.s32.totalorder %s311, %s314
      %p323 = scmp.eq.s32.totalorder %s44, 9
      %p324 = por %p322, %p323
      %p325 = scmp.ne.s32.totalorder %s314, %s315
      %p326 = scmp.eq.s32.totalorder %s44, 0
      %p327 = por %p325, %p326
      %p328 = scmp.ne.s32.totalorder %s314, %s315
      %p329 = scmp.eq.s32.totalorder %s45, 9
      %p330 = por %p328, %p329
      %p332 = scmp.ne.s32.totalorder %s315, %s331
      %p333 = scmp.eq.s32.totalorder %s45, 0
      %p334 = por %p332, %p333
      %s335 = ssub.s32 %s46, %s58
      %p336 = scmp.eq.s32.totalorder %s335, 0
      %s338 = sadd.s32 %s337, 1
      %s339 = scalar_select %p336, %s337, %s338
      %p342 = pneg %p336
      %p343 = scmp.eq.s32.totalorder %s39, 9
      %p344 = por %p342, %p343
      %p345 = scmp.ne.s32.totalorder %s337, %s340
      %p346 = scmp.eq.s32.totalorder %s39, 0
      %p347 = por %p345, %p346
      %p348 = scmp.ne.s32.totalorder %s337, %s340
      %p349 = scmp.eq.s32.totalorder %s44, 9
      %p350 = por %p348, %p349
      %p351 = scmp.ne.s32.totalorder %s340, %s341
      %p352 = scmp.eq.s32.totalorder %s44, 0
      %p353 = por %p351, %p352
      %p354 = scmp.ne.s32.totalorder %s340, %s341
      %p355 = scmp.eq.s32.totalorder %s45, 9
      %p356 = por %p354, %p355
      %p358 = scmp.ne.s32.totalorder %s341, %s357
      %p359 = scmp.eq.s32.totalorder %s45, 0
      %p360 = por %p358, %p359
      %s361 = ssub.s32 %s46, %s58
      %p362 = scmp.eq.s32.totalorder %s361, 0
      %s364 = sadd.s32 %s363, 1
      %s365 = scalar_select %p362, %s363, %s364
      %p368 = pneg %p362
      %p369 = scmp.eq.s32.totalorder %s39, 9
      %p370 = por %p368, %p369
      %p371 = scmp.ne.s32.totalorder %s363, %s366
      %p372 = scmp.eq.s32.totalorder %s39, 0
      %p373 = por %p371, %p372
      %p374 = scmp.ne.s32.totalorder %s363, %s366
      %p375 = scmp.eq.s32.totalorder %s44, 9
      %p376 = por %p374, %p375
      %p377 = scmp.ne.s32.totalorder %s366, %s367
      %p378 = scmp.eq.s32.totalorder %s44, 0
      %p379 = por %p377, %p378
      %p380 = scmp.ne.s32.totalorder %s366, %s367
      %p381 = scmp.eq.s32.totalorder %s45, 9
      %p382 = por %p380, %p381
      %p384 = scmp.ne.s32.totalorder %s367, %s383
      %p385 = scmp.eq.s32.totalorder %s45, 0
      %p386 = por %p384, %p385
      %s388 = sadd.s32 %s387, 1
      %p391 = scmp.eq.s32.totalorder %s39, 9
      %p392 = scmp.ne.s32.totalorder %s387, %s389
      %p393 = scmp.eq.s32.totalorder %s39, 0
      %p394 = por %p392, %p393
      %p395 = scmp.ne.s32.totalorder %s387, %s389
      %p396 = scmp.eq.s32.totalorder %s44, 9
      %p397 = por %p395, %p396
      %p398 = scmp.ne.s32.totalorder %s389, %s390
      %p399 = scmp.eq.s32.totalorder %s44, 0
      %p400 = por %p398, %p399
      %p401 = scmp.ne.s32.totalorder %s389, %s390
      %p402 = scmp.eq.s32.totalorder %s45, 9
      %p403 = por %p401, %p402
      %p405 = scmp.ne.s32.totalorder %s390, %s404
      %p406 = scmp.eq.s32.totalorder %s45, 0
      %p407 = por %p405, %p406
      %s409 = sadd.s32 %s408, 1
      %p412 = scmp.eq.s32.totalorder %s39, 9
      %p413 = scmp.ne.s32.totalorder %s408, %s410
      %p414 = scmp.eq.s32.totalorder %s39, 0
      %p415 = por %p413, %p414
      %p416 = scmp.ne.s32.totalorder %s408, %s410
      %p417 = scmp.eq.s32.totalorder %s44, 9
      %p418 = por %p416, %p417
      %p419 = scmp.ne.s32.totalorder %s410, %s411
      %p420 = scmp.eq.s32.totalorder %s44, 0
      %p421 = por %p419, %p420
      %p422 = scmp.ne.s32.totalorder %s410, %s411
      %p423 = scmp.eq.s32.totalorder %s45, 9
      %p424 = por %p422, %p423
      %p426 = scmp.ne.s32.totalorder %s411, %s425
      %p427 = scmp.eq.s32.totalorder %s45, 0
      %p428 = por %p426, %p427
      %p429 = scmp.le.s32.totalorder 1, %s39
      %p430 = scmp.lt.s32.totalorder %s39, 11
      %p431 = pnand %p429, %p430
      %p432 = pneg %p431
      // Predicated region
      $region9: #{tpu_custom_call.1} parent=5 // pred_check
        _
      $region10: #{tpu_custom_call.1} parent=5 // pred_check_branch
        %434 = sbr.rel (%p431) target = $region12
      $region11: #{tpu_custom_call.1} parent=5 // pred_region
        %s435 = ssub.s32 %s39, 1
        // Predicated region
        $region13: #{tpu_custom_call.1} parent=11 // pred_check
          %p436 = pneg %p72
        $region14: #{tpu_custom_call.1} parent=11 // pred_check_branch
          %438 = sbr.rel (%p436) target = $region16
        $region15: #{tpu_custom_call.1} parent=11 // pred_region
          %440 = vsyncadd [#allocation6], 0
          %s441 = sshll.u32 %s0, 4
          %s442 = int_to_ptr.hbm [resolvable:$true] %s441
          %s443 = sshll.u32 [#allocation5], 4
          %s444 = int_to_ptr.vmem [resolvable:$true] %s443
          %449 = dma.hbm_to_vmem [thread:$0]  %s442, 2048, %s444, [#allocation6], 128, 128, 8
        $region16: #{tpu_custom_call.1} parent=11 // pred_fallthru
          _
        // Predicated region
        $region17: #{tpu_custom_call.1} parent=11 // pred_check
          %p450 = pneg %p171
        $region18: #{tpu_custom_call.1} parent=11 // pred_check_branch
          %452 = sbr.rel (%p450) target = $region20
        $region19: #{tpu_custom_call.1} parent=11 // pred_region
          %454 = vsyncadd [#allocation12], 0
          %s456 = sshll.u32 %s4, 4
          %s457 = int_to_ptr.hbm [resolvable:$true] %s456
          %s458 = sshll.u32 [#allocation13], 4
          %s459 = int_to_ptr.vmem [resolvable:$true] %s458
          %461 = dma.hbm_to_vmem [thread:$0]  %s457, 16, %s459, [#allocation12]
        $region20: #{tpu_custom_call.1} parent=11 // pred_fallthru
          _
      $region12: #{tpu_custom_call.1} parent=5 // pred_fallthru
        _
      %p462 = scmp.lt.s32.totalorder %s39, 10
      // Predicated region
      $region21: #{tpu_custom_call.1} parent=5 // pred_check
        %p463 = pneg %p462
      $region22: #{tpu_custom_call.1} parent=5 // pred_check_branch
        %465 = sbr.rel (%p463) target = $region24
      $region23: #{tpu_custom_call.1} parent=5 // pred_region
        // Predicated region
        $region25: #{tpu_custom_call.1} parent=23 // pred_check
          %p466 = pneg %p92
        $region26: #{tpu_custom_call.1} parent=23 // pred_check_branch
          %468 = sbr.rel (%p466) target = $region28
        $region27: #{tpu_custom_call.1} parent=23 // pred_region
          %s469 = sand.u32 %s39, 1
          %s470 = scalar_lea.sflag [#allocation9], %s469
          %s471 = sand.u32 %s82, 1
          %s472 = smul.addr %s471, 128
          %s473 = scalar_lea.vmem [#allocation8], %s472
          %s474 = smul.u32 16, %s47
          %476 = vsyncadd %s470, 0
          %s477 = smul.addr %s474, 8
          %s478 = scalar_lea.hbm %s1, %s477
          %s479 = sshll.u32 %s478, 4
          %s480 = int_to_ptr.hbm [resolvable:$true] %s479
          %s481 = sshll.u32 %s473, 4
          %s482 = int_to_ptr.vmem [resolvable:$true] %s481
          %487 = dma.hbm_to_vmem [thread:$0]  %s480, 2048, %s482, %s470, 128, 128, 8
        $region28: #{tpu_custom_call.1} parent=23 // pred_fallthru
          _
        // Predicated region
        $region29: #{tpu_custom_call.1} parent=23 // pred_check
          %p488 = pneg %p118
        $region30: #{tpu_custom_call.1} parent=23 // pred_check_branch
          %490 = sbr.rel (%p488) target = $region32
        $region31: #{tpu_custom_call.1} parent=23 // pred_region
          %s491 = sand.u32 %s39, 1
          %s492 = scalar_lea.sflag [#allocation9], %s491
          %s493 = sand.u32 %s108, 1
          %s494 = smul.addr %s493, 64
          %s495 = scalar_lea.vmem [#allocation10], %s494
          %s496 = smul.u32 16, %s47
          %498 = vsyncadd %s492, 0
          %s499 = smul.addr %s496, 4
          %s500 = scalar_lea.hbm %s2, %s499
          %s501 = sshll.u32 %s500, 4
          %s502 = int_to_ptr.hbm [resolvable:$true] %s501
          %s503 = sshll.u32 %s495, 4
          %s504 = int_to_ptr.vmem [resolvable:$true] %s503
          %509 = dma.hbm_to_vmem [thread:$0]  %s502, 1024, %s504, %s492, 64, 64, 4
        $region32: #{tpu_custom_call.1} parent=23 // pred_fallthru
          _
        // Predicated region
        $region33: #{tpu_custom_call.1} parent=23 // pred_check
          %p510 = pneg %p144
        $region34: #{tpu_custom_call.1} parent=23 // pred_check_branch
          %512 = sbr.rel (%p510) target = $region36
        $region35: #{tpu_custom_call.1} parent=23 // pred_region
          %s513 = sand.u32 %s39, 1
          %s514 = scalar_lea.sflag [#allocation12], %s513
          %s515 = sand.u32 %s134, 1
          %s516 = smul.addr %s515, 64
          %s517 = scalar_lea.vmem [#allocation11], %s516
          %519 = vsyncadd %s514, 0
          %s520 = smul.addr %s47, 4
          %s521 = scalar_lea.hbm %s3, %s520
          %s522 = sshll.u32 %s521, 4
          %s523 = int_to_ptr.hbm [resolvable:$true] %s522
          %s524 = sshll.u32 %s517, 4
          %s525 = int_to_ptr.vmem [resolvable:$true] %s524
          %530 = dma.hbm_to_vmem [thread:$0]  %s523, 1024, %s525, %s514, 128, 64, 4
        $region36: #{tpu_custom_call.1} parent=23 // pred_fallthru
          _
        // Predicated region
        $region37: #{tpu_custom_call.1} parent=23 // pred_check
          %p531 = pneg %p191
        $region38: #{tpu_custom_call.1} parent=23 // pred_check_branch
          %533 = sbr.rel (%p531) target = $region40
        $region39: #{tpu_custom_call.1} parent=23 // pred_region
          %s534 = sand.u32 %s39, 1
          %s535 = scalar_lea.sflag [#allocation15], %s534
          %s536 = sand.u32 %s181, 1
          %s537 = smul.addr %s536, 256
          %s538 = scalar_lea.vmem [#allocation14], %s537
          %540 = vsyncadd %s535, 0
          %s541 = smul.addr %s46, 32
          %s542 = smul.addr %s541, 8
          %s543 = scalar_lea.hbm %s5, %s542
          %s544 = sshll.u32 %s543, 4
          %s545 = int_to_ptr.hbm [resolvable:$true] %s544
          %s546 = sshll.u32 %s538, 4
          %s547 = int_to_ptr.vmem [resolvable:$true] %s546
          %552 = dma.hbm_to_vmem [thread:$0]  %s545, 4096, %s547, %s535, 256, 256, 16
        $region40: #{tpu_custom_call.1} parent=23 // pred_fallthru
          _
        // Predicated region
        $region41: #{tpu_custom_call.1} parent=23 // pred_check
          %p553 = pneg %p217
        $region42: #{tpu_custom_call.1} parent=23 // pred_check_branch
          %555 = sbr.rel (%p553) target = $region44
        $region43: #{tpu_custom_call.1} parent=23 // pred_region
          %s556 = sand.u32 %s39, 1
          %s557 = scalar_lea.sflag [#allocation15], %s556
          %s558 = sand.u32 %s207, 1
          %s559 = smul.addr %s558, 2
          %s560 = scalar_lea.vmem [#allocation16], %s559
          %562 = vsyncadd %s557, 0
          %s563 = smul.addr %s46, 2
          %s564 = scalar_lea.hbm %s6, %s563
          %s566 = sshll.u32 %s564, 4
          %s567 = int_to_ptr.hbm [resolvable:$true] %s566
          %s568 = sshll.u32 %s560, 4
          %s569 = int_to_ptr.vmem [resolvable:$true] %s568
          %571 = dma.hbm_to_vmem [thread:$0]  %s567, 32, %s569, %s557
        $region44: #{tpu_custom_call.1} parent=23 // pred_fallthru
          _
        // Predicated region
        $region45: #{tpu_custom_call.1} parent=23 // pred_check
          %p572 = pneg %p243
        $region46: #{tpu_custom_call.1} parent=23 // pred_check_branch
          %574 = sbr.rel (%p572) target = $region48
        $region47: #{tpu_custom_call.1} parent=23 // pred_region
          %s575 = sand.u32 %s39, 1
          %s576 = scalar_lea.sflag [#allocation18], %s575
          %s577 = sand.u32 %s233, 1
          %s578 = smul.addr %s577, 2
          %s579 = scalar_lea.vmem [#allocation17], %s578
          %581 = vsyncadd %s576, 0
          %s582 = smul.addr %s46, 2
          %s583 = scalar_lea.hbm %s7, %s582
          %s585 = sshll.u32 %s583, 4
          %s586 = int_to_ptr.hbm [resolvable:$true] %s585
          %s587 = sshll.u32 %s579, 4
          %s588 = int_to_ptr.vmem [resolvable:$true] %s587
          %590 = dma.hbm_to_vmem [thread:$0]  %s586, 32, %s588, %s576
        $region48: #{tpu_custom_call.1} parent=23 // pred_fallthru
          _
        // Predicated region
        $region49: #{tpu_custom_call.1} parent=23 // pred_check
          %p591 = pneg %p269
        $region50: #{tpu_custom_call.1} parent=23 // pred_check_branch
          %593 = sbr.rel (%p591) target = $region52
        $region51: #{tpu_custom_call.1} parent=23 // pred_region
          %s594 = sand.u32 %s39, 1
          %s595 = scalar_lea.sflag [#allocation18], %s594
          %s596 = sand.u32 %s259, 1
          %s597 = smul.addr %s596, 2
          %s598 = scalar_lea.vmem [#allocation19], %s597
          %600 = vsyncadd %s595, 0
          %s601 = smul.addr %s46, 2
          %s602 = scalar_lea.hbm %s8, %s601
          %s604 = sshll.u32 %s602, 4
          %s605 = int_to_ptr.hbm [resolvable:$true] %s604
          %s606 = sshll.u32 %s598, 4
          %s607 = int_to_ptr.vmem [resolvable:$true] %s606
          %609 = dma.hbm_to_vmem [thread:$0]  %s605, 32, %s607, %s595
        $region52: #{tpu_custom_call.1} parent=23 // pred_fallthru
          _
        // Predicated region
        $region53: #{tpu_custom_call.1} parent=23 // pred_check
          %p610 = pneg %p295
        $region54: #{tpu_custom_call.1} parent=23 // pred_check_branch
          %612 = sbr.rel (%p610) target = $region56
        $region55: #{tpu_custom_call.1} parent=23 // pred_region
          %s613 = sand.u32 %s39, 1
          %s614 = scalar_lea.sflag [#allocation21], %s613
          %s615 = sand.u32 %s285, 1
          %s616 = smul.addr %s615, 256
          %s617 = scalar_lea.vmem [#allocation20], %s616
          %619 = vsyncadd %s614, 0
          %s620 = smul.addr %s46, 32
          %s621 = smul.addr %s620, 8
          %s622 = scalar_lea.hbm %s9, %s621
          %s623 = sshll.u32 %s622, 4
          %s624 = int_to_ptr.hbm [resolvable:$true] %s623
          %s625 = sshll.u32 %s617, 4
          %s626 = int_to_ptr.vmem [resolvable:$true] %s625
          %631 = dma.hbm_to_vmem [thread:$0]  %s624, 4096, %s626, %s614, 128, 128, 8
        $region56: #{tpu_custom_call.1} parent=23 // pred_fallthru
          _
        // Predicated region
        $region57: #{tpu_custom_call.1} parent=23 // pred_check
          %p632 = pneg %p321
        $region58: #{tpu_custom_call.1} parent=23 // pred_check_branch
          %634 = sbr.rel (%p632) target = $region60
        $region59: #{tpu_custom_call.1} parent=23 // pred_region
          %p635 = scmp.lt.s32.totalorder %s46, 4
          %s636 = scalar_select %p635, %s46, 4
          %s637 = scalar_lea.vmem %s10, %s636
        $region60: #{tpu_custom_call.1} parent=23 // pred_fallthru
          _
        // Predicated region
        $region61: #{tpu_custom_call.1} parent=23 // pred_check
          %p638 = pneg %p347
        $region62: #{tpu_custom_call.1} parent=23 // pred_check_branch
          %640 = sbr.rel (%p638) target = $region64
        $region63: #{tpu_custom_call.1} parent=23 // pred_region
          %p641 = scmp.lt.s32.totalorder %s46, 4
          %s642 = scalar_select %p641, %s46, 4
          %s643 = scalar_lea.vmem %s11, %s642
        $region64: #{tpu_custom_call.1} parent=23 // pred_fallthru
          _
        // Predicated region
        $region65: #{tpu_custom_call.1} parent=23 // pred_check
          %p644 = pneg %p373
        $region66: #{tpu_custom_call.1} parent=23 // pred_check_branch
          %646 = sbr.rel (%p644) target = $region68
        $region67: #{tpu_custom_call.1} parent=23 // pred_region
          %s647 = sand.u32 %s39, 1
          %s648 = scalar_lea.sflag [#allocation21], %s647
          %s649 = sand.u32 %s363, 1
          %s650 = scalar_lea.vmem [#allocation22], %s649
          %652 = vsyncadd %s648, 0
          %s653 = scalar_lea.hbm %s12, %s46
          %s655 = sshll.u32 %s653, 4
          %s656 = int_to_ptr.hbm [resolvable:$true] %s655
          %s657 = sshll.u32 %s650, 4
          %s658 = int_to_ptr.vmem [resolvable:$true] %s657
          %660 = dma.hbm_to_vmem [thread:$0]  %s656, 16, %s658, %s648
        $region68: #{tpu_custom_call.1} parent=23 // pred_fallthru
          _
      $region24: #{tpu_custom_call.1} parent=5 // pred_fallthru
        _
      %p661 = scmp.le.s32.totalorder 1, %s39
      %p662 = scmp.lt.s32.totalorder %s39, 11
      %p663 = pnand %p661, %p662
      %p664 = pneg %p663
      // Predicated region
      $region69: #{tpu_custom_call.1} parent=5 // pred_check
        _
      $region70: #{tpu_custom_call.1} parent=5 // pred_check_branch
        %666 = sbr.rel (%p663) target = $region72
      $region71: #{tpu_custom_call.1} parent=5 // pred_region
        %s667 = ssub.s32 %s39, 1
        // Predicated region
        $region73: #{tpu_custom_call.1} parent=71 // pred_check
          %p668 = pneg %p72
        $region74: #{tpu_custom_call.1} parent=71 // pred_check_branch
          %670 = sbr.rel (%p668) target = $region76
        $region75: #{tpu_custom_call.1} parent=71 // pred_region
          %672 = dma.done [#allocation6], 2048
        $region76: #{tpu_custom_call.1} parent=71 // pred_fallthru
          _
        %s673 = sand.u32 %s44, 1
        %s674 = scalar_lea.sflag [#allocation9], %s673
        %s675 = sand.u32 %s85, 1
        %s676 = smul.addr %s675, 128
        %s677 = scalar_lea.vmem [#allocation8], %s676
        // Predicated region
        $region77: #{tpu_custom_call.1} parent=71 // pred_check
          %p678 = pneg %p98
        $region78: #{tpu_custom_call.1} parent=71 // pred_check_branch
          %680 = sbr.rel (%p678) target = $region80
        $region79: #{tpu_custom_call.1} parent=71 // pred_region
          %682 = dma.done %s674, 2048
        $region80: #{tpu_custom_call.1} parent=71 // pred_fallthru
          _
        %s683 = sand.u32 %s44, 1
        %s684 = scalar_lea.sflag [#allocation9], %s683
        %s685 = sand.u32 %s111, 1
        %s686 = smul.addr %s685, 64
        %s687 = scalar_lea.vmem [#allocation10], %s686
        // Predicated region
        $region81: #{tpu_custom_call.1} parent=71 // pred_check
          %p688 = pneg %p124
        $region82: #{tpu_custom_call.1} parent=71 // pred_check_branch
          %690 = sbr.rel (%p688) target = $region84
        $region83: #{tpu_custom_call.1} parent=71 // pred_region
          %692 = dma.done %s684, 1024
        $region84: #{tpu_custom_call.1} parent=71 // pred_fallthru
          _
        %s693 = sand.u32 %s44, 1
        %s694 = scalar_lea.sflag [#allocation12], %s693
        %s695 = sand.u32 %s137, 1
        %s696 = smul.addr %s695, 64
        %s697 = scalar_lea.vmem [#allocation11], %s696
        // Predicated region
        $region85: #{tpu_custom_call.1} parent=71 // pred_check
          %p698 = pneg %p150
        $region86: #{tpu_custom_call.1} parent=71 // pred_check_branch
          %700 = sbr.rel (%p698) target = $region88
        $region87: #{tpu_custom_call.1} parent=71 // pred_region
          %702 = dma.done %s694, 1024
        $region88: #{tpu_custom_call.1} parent=71 // pred_fallthru
          _
        // Predicated region
        $region89: #{tpu_custom_call.1} parent=71 // pred_check
          %p703 = pneg %p171
        $region90: #{tpu_custom_call.1} parent=71 // pred_check_branch
          %705 = sbr.rel (%p703) target = $region92
        $region91: #{tpu_custom_call.1} parent=71 // pred_region
          %707 = dma.done [#allocation12], 16
        $region92: #{tpu_custom_call.1} parent=71 // pred_fallthru
          _
        %s708 = sand.u32 %s44, 1
        %s709 = scalar_lea.sflag [#allocation15], %s708
        %s710 = sand.u32 %s184, 1
        %s711 = smul.addr %s710, 256
        %s712 = scalar_lea.vmem [#allocation14], %s711
        // Predicated region
        $region93: #{tpu_custom_call.1} parent=71 // pred_check
          %p713 = pneg %p197
        $region94: #{tpu_custom_call.1} parent=71 // pred_check_branch
          %715 = sbr.rel (%p713) target = $region96
        $region95: #{tpu_custom_call.1} parent=71 // pred_region
          %717 = dma.done %s709, 4096
        $region96: #{tpu_custom_call.1} parent=71 // pred_fallthru
          _
        %s718 = sand.u32 %s44, 1
        %s719 = scalar_lea.sflag [#allocation15], %s718
        %s720 = sand.u32 %s210, 1
        %s721 = smul.addr %s720, 2
        %s722 = scalar_lea.vmem [#allocation16], %s721
        // Predicated region
        $region97: #{tpu_custom_call.1} parent=71 // pred_check
          %p723 = pneg %p223
        $region98: #{tpu_custom_call.1} parent=71 // pred_check_branch
          %725 = sbr.rel (%p723) target = $region100
        $region99: #{tpu_custom_call.1} parent=71 // pred_region
          %727 = dma.done %s719, 32
        $region100: #{tpu_custom_call.1} parent=71 // pred_fallthru
          _
        %s728 = sand.u32 %s44, 1
        %s729 = scalar_lea.sflag [#allocation18], %s728
        %s730 = sand.u32 %s236, 1
        %s731 = smul.addr %s730, 2
        %s732 = scalar_lea.vmem [#allocation17], %s731
        // Predicated region
        $region101: #{tpu_custom_call.1} parent=71 // pred_check
          %p733 = pneg %p249
        $region102: #{tpu_custom_call.1} parent=71 // pred_check_branch
          %735 = sbr.rel (%p733) target = $region104
        $region103: #{tpu_custom_call.1} parent=71 // pred_region
          %737 = dma.done %s729, 32
        $region104: #{tpu_custom_call.1} parent=71 // pred_fallthru
          _
        %s738 = sand.u32 %s44, 1
        %s739 = scalar_lea.sflag [#allocation18], %s738
        %s740 = sand.u32 %s262, 1
        %s741 = smul.addr %s740, 2
        %s742 = scalar_lea.vmem [#allocation19], %s741
        // Predicated region
        $region105: #{tpu_custom_call.1} parent=71 // pred_check
          %p743 = pneg %p275
        $region106: #{tpu_custom_call.1} parent=71 // pred_check_branch
          %745 = sbr.rel (%p743) target = $region108
        $region107: #{tpu_custom_call.1} parent=71 // pred_region
          %747 = dma.done %s739, 32
        $region108: #{tpu_custom_call.1} parent=71 // pred_fallthru
          _
        %s748 = sand.u32 %s44, 1
        %s749 = scalar_lea.sflag [#allocation21], %s748
        %s750 = sand.u32 %s288, 1
        %s751 = smul.addr %s750, 256
        %s752 = scalar_lea.vmem [#allocation20], %s751
        // Predicated region
        $region109: #{tpu_custom_call.1} parent=71 // pred_check
          %p753 = pneg %p301
        $region110: #{tpu_custom_call.1} parent=71 // pred_check_branch
          %755 = sbr.rel (%p753) target = $region112
        $region111: #{tpu_custom_call.1} parent=71 // pred_region
          %757 = dma.done %s749, 4096
        $region112: #{tpu_custom_call.1} parent=71 // pred_fallthru
          _
        %s758 = sand.u32 %s44, 1
        %s759 = scalar_lea.sflag [#allocation21], %s758
        %s760 = sand.u32 %s366, 1
        %s761 = scalar_lea.vmem [#allocation22], %s760
        // Predicated region
        $region113: #{tpu_custom_call.1} parent=71 // pred_check
          %p762 = pneg %p379
        $region114: #{tpu_custom_call.1} parent=71 // pred_check_branch
          %764 = sbr.rel (%p762) target = $region116
        $region115: #{tpu_custom_call.1} parent=71 // pred_region
          %766 = dma.done %s759, 16
        $region116: #{tpu_custom_call.1} parent=71 // pred_fallthru
          _
        %p767 = pneg %p72
        %p768 = pneg %p69
        %s769 = sand.u32 %s44, 1
        %s770 = scalar_lea.sflag [#allocation9], %s769
        %s771 = sand.u32 %s85, 1
        %s772 = smul.addr %s771, 128
        %s773 = scalar_lea.vmem [#allocation8], %s772
        %p774 = pneg %p98
        %p775 = pneg %p95
        %s776 = sand.u32 %s44, 1
        %s777 = scalar_lea.sflag [#allocation9], %s776
        %s778 = sand.u32 %s111, 1
        %s779 = smul.addr %s778, 64
        %s780 = scalar_lea.vmem [#allocation10], %s779
        %p781 = pneg %p124
        %p782 = pneg %p121
        %s783 = sand.u32 %s44, 1
        %s784 = scalar_lea.sflag [#allocation12], %s783
        %s785 = sand.u32 %s137, 1
        %s786 = smul.addr %s785, 64
        %s787 = scalar_lea.vmem [#allocation11], %s786
        %p788 = pneg %p150
        %p789 = pneg %p147
        %p790 = pneg %p171
        %p791 = pneg %p168
        %s792 = sand.u32 %s44, 1
        %s793 = scalar_lea.sflag [#allocation15], %s792
        %s794 = sand.u32 %s184, 1
        %s795 = smul.addr %s794, 256
        %s796 = scalar_lea.vmem [#allocation14], %s795
        %p797 = pneg %p197
        %p798 = pneg %p194
        %s799 = sand.u32 %s44, 1
        %s800 = scalar_lea.sflag [#allocation15], %s799
        %s801 = sand.u32 %s210, 1
        %s802 = smul.addr %s801, 2
        %s803 = scalar_lea.vmem [#allocation16], %s802
        %p804 = pneg %p223
        %p805 = pneg %p220
        %s806 = sand.u32 %s44, 1
        %s807 = scalar_lea.sflag [#allocation18], %s806
        %s808 = sand.u32 %s236, 1
        %s809 = smul.addr %s808, 2
        %s810 = scalar_lea.vmem [#allocation17], %s809
        %p811 = pneg %p249
        %p812 = pneg %p246
        %s813 = sand.u32 %s44, 1
        %s814 = scalar_lea.sflag [#allocation18], %s813
        %s815 = sand.u32 %s262, 1
        %s816 = smul.addr %s815, 2
        %s817 = scalar_lea.vmem [#allocation19], %s816
        %p818 = pneg %p275
        %p819 = pneg %p272
        %s820 = sand.u32 %s44, 1
        %s821 = scalar_lea.sflag [#allocation21], %s820
        %s822 = sand.u32 %s288, 1
        %s823 = smul.addr %s822, 256
        %s824 = scalar_lea.vmem [#allocation20], %s823
        %p825 = pneg %p301
        %p826 = pneg %p298
        %p827 = scmp.lt.s32.totalorder %s48, 4
        %s828 = scalar_select %p827, %s48, 4
        %s829 = scalar_lea.vmem %s10, %s828
        %p830 = pneg %p327
        %p831 = pneg %p324
        %p832 = scmp.lt.s32.totalorder %s48, 4
        %s833 = scalar_select %p832, %s48, 4
        %s834 = scalar_lea.vmem %s11, %s833
        %p835 = pneg %p353
        %p836 = pneg %p350
        %s837 = sand.u32 %s44, 1
        %s838 = scalar_lea.sflag [#allocation21], %s837
        %s839 = sand.u32 %s366, 1
        %s840 = scalar_lea.vmem [#allocation22], %s839
        %p841 = pneg %p379
        %p842 = pneg %p376
        %p843 = pneg %p400
        %p844 = pneg %p397
        %p845 = pneg %p421
        %p846 = pneg %p418
        %s847 = smul.u32 16, %s49
        %s848 = smul.u32 16, %s49
        %p849 = scmp.lt.s32.totalorder %s48, 4
        %s850 = scalar_select %p849, %s48, 4
        %s851 = scalar_lea.vmem %s10, %s850
        %p852 = scmp.lt.s32.totalorder %s48, 4
        %s853 = scalar_select %p852, %s48, 4
        %s854 = scalar_lea.vmem %s11, %s853
        %p855 = scmp.eq.s32.totalorder %s48, 0
        %p856 = scmp.eq.s32.totalorder %s49, 0
        %p857 = pnand %p855, %p856
        %p858 = pneg %p857
        // Predicated region
        $region117: #{tpu_custom_call.1} parent=71 // pred_check
          _
        $region118: #{tpu_custom_call.1} parent=71 // pred_check_branch
          %860 = sbr.rel (%p857) target = $region120
        $region119: #{tpu_custom_call.1} parent=71 // pred_region
          %v861 = vld [vmem:[#allocation5] sm:$0xff]
          %v862 = vld [vmem:[#allocation5 + $0x8] sm:$0xff]
          %v863 = vld [vmem:[#allocation5 + $0x10] sm:$0xff]
          %v864 = vld [vmem:[#allocation5 + $0x18] sm:$0xff]
          %v865 = vld [vmem:[#allocation5 + $0x20] sm:$0xff]
          %v866 = vld [vmem:[#allocation5 + $0x28] sm:$0xff]
          %v867 = vld [vmem:[#allocation5 + $0x30] sm:$0xff]
          %v868 = vld [vmem:[#allocation5 + $0x38] sm:$0xff]
          %v869 = vld [vmem:[#allocation5 + $0x40] sm:$0xff]
          %v870 = vld [vmem:[#allocation5 + $0x48] sm:$0xff]
          %v871 = vld [vmem:[#allocation5 + $0x50] sm:$0xff]
          %v872 = vld [vmem:[#allocation5 + $0x58] sm:$0xff]
          %v873 = vld [vmem:[#allocation5 + $0x60] sm:$0xff]
          %v874 = vld [vmem:[#allocation5 + $0x68] sm:$0xff]
          %v875 = vld [vmem:[#allocation5 + $0x70] sm:$0xff]
          %v876 = vld [vmem:[#allocation5 + $0x78] sm:$0xff]
          %877 = vst [vmem:[#allocation2] sm:$0xff] %v861
          %878 = vst [vmem:[#allocation2 + $0x8] sm:$0xff] %v862
          %879 = vst [vmem:[#allocation2 + $0x10] sm:$0xff] %v863
          %880 = vst [vmem:[#allocation2 + $0x18] sm:$0xff] %v864
          %881 = vst [vmem:[#allocation2 + $0x20] sm:$0xff] %v865
          %882 = vst [vmem:[#allocation2 + $0x28] sm:$0xff] %v866
          %883 = vst [vmem:[#allocation2 + $0x30] sm:$0xff] %v867
          %884 = vst [vmem:[#allocation2 + $0x38] sm:$0xff] %v868
          %885 = vst [vmem:[#allocation2 + $0x40] sm:$0xff] %v869
          %886 = vst [vmem:[#allocation2 + $0x48] sm:$0xff] %v870
          %887 = vst [vmem:[#allocation2 + $0x50] sm:$0xff] %v871
          %888 = vst [vmem:[#allocation2 + $0x58] sm:$0xff] %v872
          %889 = vst [vmem:[#allocation2 + $0x60] sm:$0xff] %v873
          %890 = vst [vmem:[#allocation2 + $0x68] sm:$0xff] %v874
          %891 = vst [vmem:[#allocation2 + $0x70] sm:$0xff] %v875
          %892 = vst [vmem:[#allocation2 + $0x78] sm:$0xff] %v876
        $region120: #{tpu_custom_call.1} parent=71 // pred_fallthru
          _
        // Predicated region
        $region121: #{tpu_custom_call.1} parent=71 // pred_check
          %p893 = pneg %p856
        $region122: #{tpu_custom_call.1} parent=71 // pred_check_branch
          %895 = sbr.rel (%p893) target = $region124
        $region123: #{tpu_custom_call.1} parent=71 // pred_region
          %896 = vst [vmem:[#allocation4] sm:$0xff] 0.0
          %897 = vst [vmem:[#allocation4 + $0x8] sm:$0xff] 0.0
          %898 = vst [vmem:[#allocation4 + $0x10] sm:$0xff] 0.0
          %899 = vst [vmem:[#allocation4 + $0x18] sm:$0xff] 0.0
          %900 = vst [vmem:[#allocation4 + $0x20] sm:$0xff] 0.0
          %901 = vst [vmem:[#allocation4 + $0x28] sm:$0xff] 0.0
          %902 = vst [vmem:[#allocation4 + $0x30] sm:$0xff] 0.0
          %903 = vst [vmem:[#allocation4 + $0x38] sm:$0xff] 0.0
          %904 = vst [vmem:[#allocation4 + $0x40] sm:$0xff] 0.0
          %905 = vst [vmem:[#allocation4 + $0x48] sm:$0xff] 0.0
          %906 = vst [vmem:[#allocation4 + $0x50] sm:$0xff] 0.0
          %907 = vst [vmem:[#allocation4 + $0x58] sm:$0xff] 0.0
          %908 = vst [vmem:[#allocation4 + $0x60] sm:$0xff] 0.0
          %909 = vst [vmem:[#allocation4 + $0x68] sm:$0xff] 0.0
          %910 = vst [vmem:[#allocation4 + $0x70] sm:$0xff] 0.0
          %911 = vst [vmem:[#allocation4 + $0x78] sm:$0xff] 0.0
          %v912 = vld [vmem:[#allocation2] sm:$0xff]
          %v913 = vld [vmem:[#allocation2 + $0x8] sm:$0xff]
          %v914 = vld [vmem:[#allocation2 + $0x10] sm:$0xff]
          %v915 = vld [vmem:[#allocation2 + $0x18] sm:$0xff]
          %v916 = vld [vmem:[#allocation2 + $0x20] sm:$0xff]
          %v917 = vld [vmem:[#allocation2 + $0x28] sm:$0xff]
          %v918 = vld [vmem:[#allocation2 + $0x30] sm:$0xff]
          %v919 = vld [vmem:[#allocation2 + $0x38] sm:$0xff]
          %v920 = vld [vmem:[#allocation2 + $0x40] sm:$0xff]
          %v921 = vld [vmem:[#allocation2 + $0x48] sm:$0xff]
          %v922 = vld [vmem:[#allocation2 + $0x50] sm:$0xff]
          %v923 = vld [vmem:[#allocation2 + $0x58] sm:$0xff]
          %v924 = vld [vmem:[#allocation2 + $0x60] sm:$0xff]
          %v925 = vld [vmem:[#allocation2 + $0x68] sm:$0xff]
          %v926 = vld [vmem:[#allocation2 + $0x70] sm:$0xff]
          %v927 = vld [vmem:[#allocation2 + $0x78] sm:$0xff]
          %v928 = vpack.c.bf16 %v912, %v912
          %v929 = vpack.c.bf16 %v913, %v913
          %v930 = vpack.c.bf16 %v914, %v914
          %v931 = vpack.c.bf16 %v915, %v915
          %v932 = vpack.c.bf16 %v916, %v916
          %v933 = vpack.c.bf16 %v917, %v917
          %v934 = vpack.c.bf16 %v918, %v918
          %v935 = vpack.c.bf16 %v919, %v919
          %v936 = vpack.c.bf16 %v920, %v920
          %v937 = vpack.c.bf16 %v921, %v921
          %v938 = vpack.c.bf16 %v922, %v922
          %v939 = vpack.c.bf16 %v923, %v923
          %v940 = vpack.c.bf16 %v924, %v924
          %v941 = vpack.c.bf16 %v925, %v925
          %v942 = vpack.c.bf16 %v926, %v926
          %v943 = vpack.c.bf16 %v927, %v927
          %944 = vst [vmem:[#allocation3] sm:$0xf] %v928
          %945 = vst [vmem:[#allocation3 + $0x4] sm:$0xf] %v929
          %946 = vst [vmem:[#allocation3 + $0x8] sm:$0xf] %v930
          %947 = vst [vmem:[#allocation3 + $0xc] sm:$0xf] %v931
          %948 = vst [vmem:[#allocation3 + $0x10] sm:$0xf] %v932
          %949 = vst [vmem:[#allocation3 + $0x14] sm:$0xf] %v933
          %950 = vst [vmem:[#allocation3 + $0x18] sm:$0xf] %v934
          %951 = vst [vmem:[#allocation3 + $0x1c] sm:$0xf] %v935
          %952 = vst [vmem:[#allocation3 + $0x20] sm:$0xf] %v936
          %953 = vst [vmem:[#allocation3 + $0x24] sm:$0xf] %v937
          %954 = vst [vmem:[#allocation3 + $0x28] sm:$0xf] %v938
          %955 = vst [vmem:[#allocation3 + $0x2c] sm:$0xf] %v939
          %956 = vst [vmem:[#allocation3 + $0x30] sm:$0xf] %v940
          %957 = vst [vmem:[#allocation3 + $0x34] sm:$0xf] %v941
          %958 = vst [vmem:[#allocation3 + $0x38] sm:$0xf] %v942
          %959 = vst [vmem:[#allocation3 + $0x3c] sm:$0xf] %v943
        $region124: #{tpu_custom_call.1} parent=71 // pred_fallthru
          _
        %v960 = vld [vmem:[%s687] sm:$0xf]
        %v961 = vld [vmem:[%s687 + $0x4] sm:$0xf]
        %v962 = vld [vmem:[%s687 + $0x8] sm:$0xf]
        %v963 = vld [vmem:[%s687 + $0xc] sm:$0xf]
        %v964 = vld [vmem:[%s687 + $0x10] sm:$0xf]
        %v965 = vld [vmem:[%s687 + $0x14] sm:$0xf]
        %v966 = vld [vmem:[%s687 + $0x18] sm:$0xf]
        %v967 = vld [vmem:[%s687 + $0x1c] sm:$0xf]
        %v968 = vld [vmem:[%s687 + $0x20] sm:$0xf]
        %v969 = vld [vmem:[%s687 + $0x24] sm:$0xf]
        %v970 = vld [vmem:[%s687 + $0x28] sm:$0xf]
        %v971 = vld [vmem:[%s687 + $0x2c] sm:$0xf]
        %v972 = vld [vmem:[%s687 + $0x30] sm:$0xf]
        %v973 = vld [vmem:[%s687 + $0x34] sm:$0xf]
        %v974 = vld [vmem:[%s687 + $0x38] sm:$0xf]
        %v975 = vld [vmem:[%s687 + $0x3c] sm:$0xf]
        %v976 = vld [vmem:[#allocation3] sm:$0xf]
        %v977 = vld [vmem:[#allocation3 + $0x4] sm:$0xf]
        %v978 = vld [vmem:[#allocation3 + $0x8] sm:$0xf]
        %v979 = vld [vmem:[#allocation3 + $0xc] sm:$0xf]
        %v980 = vld [vmem:[#allocation3 + $0x10] sm:$0xf]
        %v981 = vld [vmem:[#allocation3 + $0x14] sm:$0xf]
        %v982 = vld [vmem:[#allocation3 + $0x18] sm:$0xf]
        %v983 = vld [vmem:[#allocation3 + $0x1c] sm:$0xf]
        %v984 = vld [vmem:[#allocation3 + $0x20] sm:$0xf]
        %v985 = vld [vmem:[#allocation3 + $0x24] sm:$0xf]
        %v986 = vld [vmem:[#allocation3 + $0x28] sm:$0xf]
        %v987 = vld [vmem:[#allocation3 + $0x2c] sm:$0xf]
        %v988 = vld [vmem:[#allocation3 + $0x30] sm:$0xf]
        %v989 = vld [vmem:[#allocation3 + $0x34] sm:$0xf]
        %v990 = vld [vmem:[#allocation3 + $0x38] sm:$0xf]
        %v991 = vld [vmem:[#allocation3 + $0x3c] sm:$0xf]
        %v992 = vld [vmem:[%s677] sm:$0xff]
        %v993 = vld [vmem:[%s677 + $0x8] sm:$0xff]
        %v994 = vld [vmem:[%s677 + $0x10] sm:$0xff]
        %v995 = vld [vmem:[%s677 + $0x18] sm:$0xff]
        %v996 = vld [vmem:[%s677 + $0x20] sm:$0xff]
        %v997 = vld [vmem:[%s677 + $0x28] sm:$0xff]
        %v998 = vld [vmem:[%s677 + $0x30] sm:$0xff]
        %v999 = vld [vmem:[%s677 + $0x38] sm:$0xff]
        %v1000 = vld [vmem:[%s677 + $0x40] sm:$0xff]
        %v1001 = vld [vmem:[%s677 + $0x48] sm:$0xff]
        %v1002 = vld [vmem:[%s677 + $0x50] sm:$0xff]
        %v1003 = vld [vmem:[%s677 + $0x58] sm:$0xff]
        %v1004 = vld [vmem:[%s677 + $0x60] sm:$0xff]
        %v1005 = vld [vmem:[%s677 + $0x68] sm:$0xff]
        %v1006 = vld [vmem:[%s677 + $0x70] sm:$0xff]
        %v1007 = vld [vmem:[%s677 + $0x78] sm:$0xff]
        %v1024 = vunpack.c.l.b16 %v960
        %v1025 = vunpack.c.l.b16 %v961
        %v1026 = vunpack.c.l.b16 %v962
        %v1027 = vunpack.c.l.b16 %v963
        %v1028 = vunpack.c.l.b16 %v964
        %v1029 = vunpack.c.l.b16 %v965
        %v1030 = vunpack.c.l.b16 %v966
        %v1031 = vunpack.c.l.b16 %v967
        %v1032 = vunpack.c.l.b16 %v968
        %v1033 = vunpack.c.l.b16 %v969
        %v1034 = vunpack.c.l.b16 %v970
        %v1035 = vunpack.c.l.b16 %v971
        %v1036 = vunpack.c.l.b16 %v972
        %v1037 = vunpack.c.l.b16 %v973
        %v1038 = vunpack.c.l.b16 %v974
        %v1039 = vunpack.c.l.b16 %v975
        %v1040 = vpack.c.b16 %v1025, %v1024
        %v1041 = vpack.c.b16 %v1027, %v1026
        %v1042 = vpack.c.b16 %v1029, %v1028
        %v1043 = vpack.c.b16 %v1031, %v1030
        %v1044 = vpack.c.b16 %v1033, %v1032
        %v1045 = vpack.c.b16 %v1035, %v1034
        %v1046 = vpack.c.b16 %v1037, %v1036
        %v1047 = vpack.c.b16 %v1039, %v1038
        %v1072 = vunpack.c.l.b16 %v976
        %v1073 = vunpack.c.l.b16 %v977
        %v1074 = vunpack.c.l.b16 %v978
        %v1075 = vunpack.c.l.b16 %v979
        %v1076 = vunpack.c.l.b16 %v980
        %v1077 = vunpack.c.l.b16 %v981
        %v1078 = vunpack.c.l.b16 %v982
        %v1079 = vunpack.c.l.b16 %v983
        %v1080 = vunpack.c.l.b16 %v984
        %v1081 = vunpack.c.l.b16 %v985
        %v1082 = vunpack.c.l.b16 %v986
        %v1083 = vunpack.c.l.b16 %v987
        %v1084 = vunpack.c.l.b16 %v988
        %v1085 = vunpack.c.l.b16 %v989
        %v1086 = vunpack.c.l.b16 %v990
        %v1087 = vunpack.c.l.b16 %v991
        %v1088 = vpack.c.b16 %v1073, %v1072
        %v1089 = vpack.c.b16 %v1075, %v1074
        %v1090 = vpack.c.b16 %v1077, %v1076
        %v1091 = vpack.c.b16 %v1079, %v1078
        %v1092 = vpack.c.b16 %v1081, %v1080
        %v1093 = vpack.c.b16 %v1083, %v1082
        %v1094 = vpack.c.b16 %v1085, %v1084
        %v1095 = vpack.c.b16 %v1087, %v1086
        %1104 = vmatpush.bf16.msra.mxu0 %v1095
        %1105 = vmatpush.bf16.msra.mxu0 %v1094
        %1106 = vmatpush.bf16.msra.mxu0 %v1093
        %1107 = vmatpush.bf16.msra.mxu0 %v1092
        %1108 = vmatpush.bf16.msra.mxu0 %v1091
        %1109 = vmatpush.bf16.msra.mxu0 %v1090
        %1110 = vmatpush.bf16.msra.mxu0 %v1089
        %1111 = vmatpush.bf16.msra.mxu0 %v1088
        %1112 = vmatmul.bf16.gmra.mxu0 %v1040
        %v1113 = vpop.f32.mrf.mxu0
        %v1114 = vadd.f32 %v992, %v1113
        %v1115 = vpop.f32.mrf.mxu0
        %v1116 = vadd.f32 %v993, %v1115
        %1117 = vmatmul.bf16.gmra.mxu0 %v1041
        %v1118 = vpop.f32.mrf.mxu0
        %v1119 = vadd.f32 %v994, %v1118
        %v1120 = vpop.f32.mrf.mxu0
        %v1121 = vadd.f32 %v995, %v1120
        %1122 = vmatmul.bf16.gmra.mxu0 %v1042
        %v1123 = vpop.f32.mrf.mxu0
        %v1124 = vadd.f32 %v996, %v1123
        %v1125 = vpop.f32.mrf.mxu0
        %v1126 = vadd.f32 %v997, %v1125
        %1127 = vmatmul.bf16.gmra.mxu0 %v1043
        %v1128 = vpop.f32.mrf.mxu0
        %v1129 = vadd.f32 %v998, %v1128
        %v1130 = vpop.f32.mrf.mxu0
        %v1131 = vadd.f32 %v999, %v1130
        %1132 = vmatmul.bf16.gmra.mxu0 %v1044
        %v1133 = vpop.f32.mrf.mxu0
        %v1134 = vadd.f32 %v1000, %v1133
        %v1135 = vpop.f32.mrf.mxu0
        %v1136 = vadd.f32 %v1001, %v1135
        %1137 = vmatmul.bf16.gmra.mxu0 %v1045
        %v1138 = vpop.f32.mrf.mxu0
        %v1139 = vadd.f32 %v1002, %v1138
        %v1140 = vpop.f32.mrf.mxu0
        %v1141 = vadd.f32 %v1003, %v1140
        %1142 = vmatmul.bf16.gmra.mxu0 %v1046
        %v1143 = vpop.f32.mrf.mxu0
        %v1144 = vadd.f32 %v1004, %v1143
        %v1145 = vpop.f32.mrf.mxu0
        %v1146 = vadd.f32 %v1005, %v1145
        %1147 = vmatmul.bf16.gmra.mxu0 %v1047
        %v1148 = vpop.f32.mrf.mxu0
        %v1149 = vadd.f32 %v1006, %v1148
        %v1150 = vpop.f32.mrf.mxu0
        %v1151 = vadd.f32 %v1007, %v1150
        %1152 = vdwg.mxu0
        %v1153 = vmax.f32 %v1114, 0.0
        %v1154 = vmax.f32 %v1116, 0.0
        %v1155 = vmax.f32 %v1119, 0.0
        %v1156 = vmax.f32 %v1121, 0.0
        %v1157 = vmax.f32 %v1124, 0.0
        %v1158 = vmax.f32 %v1126, 0.0
        %v1159 = vmax.f32 %v1129, 0.0
        %v1160 = vmax.f32 %v1131, 0.0
        %v1161 = vmax.f32 %v1134, 0.0
        %v1162 = vmax.f32 %v1136, 0.0
        %v1163 = vmax.f32 %v1139, 0.0
        %v1164 = vmax.f32 %v1141, 0.0
        %v1165 = vmax.f32 %v1144, 0.0
        %v1166 = vmax.f32 %v1146, 0.0
        %v1167 = vmax.f32 %v1149, 0.0
        %v1168 = vmax.f32 %v1151, 0.0
        %v1169 = vld [vmem:[#allocation4] sm:$0xff]
        %v1170 = vld [vmem:[#allocation4 + $0x8] sm:$0xff]
        %v1171 = vld [vmem:[#allocation4 + $0x10] sm:$0xff]
        %v1172 = vld [vmem:[#allocation4 + $0x18] sm:$0xff]
        %v1173 = vld [vmem:[#allocation4 + $0x20] sm:$0xff]
        %v1174 = vld [vmem:[#allocation4 + $0x28] sm:$0xff]
        %v1175 = vld [vmem:[#allocation4 + $0x30] sm:$0xff]
        %v1176 = vld [vmem:[#allocation4 + $0x38] sm:$0xff]
        %v1177 = vld [vmem:[#allocation4 + $0x40] sm:$0xff]
        %v1178 = vld [vmem:[#allocation4 + $0x48] sm:$0xff]
        %v1179 = vld [vmem:[#allocation4 + $0x50] sm:$0xff]
        %v1180 = vld [vmem:[#allocation4 + $0x58] sm:$0xff]
        %v1181 = vld [vmem:[#allocation4 + $0x60] sm:$0xff]
        %v1182 = vld [vmem:[#allocation4 + $0x68] sm:$0xff]
        %v1183 = vld [vmem:[#allocation4 + $0x70] sm:$0xff]
        %v1184 = vld [vmem:[#allocation4 + $0x78] sm:$0xff]
        %v1185 = vld [vmem:[%s697] sm:$0xf]
        %v1186 = vld [vmem:[%s697 + $0x4] sm:$0xf]
        %v1187 = vld [vmem:[%s697 + $0x8] sm:$0xf]
        %v1188 = vld [vmem:[%s697 + $0xc] sm:$0xf]
        %v1189 = vld [vmem:[%s697 + $0x10] sm:$0xf]
        %v1190 = vld [vmem:[%s697 + $0x14] sm:$0xf]
        %v1191 = vld [vmem:[%s697 + $0x18] sm:$0xf]
        %v1192 = vld [vmem:[%s697 + $0x1c] sm:$0xf]
        %v1193 = vld [vmem:[%s697 + $0x20] sm:$0xf]
        %v1194 = vld [vmem:[%s697 + $0x24] sm:$0xf]
        %v1195 = vld [vmem:[%s697 + $0x28] sm:$0xf]
        %v1196 = vld [vmem:[%s697 + $0x2c] sm:$0xf]
        %v1197 = vld [vmem:[%s697 + $0x30] sm:$0xf]
        %v1198 = vld [vmem:[%s697 + $0x34] sm:$0xf]
        %v1199 = vld [vmem:[%s697 + $0x38] sm:$0xf]
        %v1200 = vld [vmem:[%s697 + $0x3c] sm:$0xf]
        %v1201 = vpack.c.bf16 %v1154, %v1153
        %v1202 = vpack.c.bf16 %v1156, %v1155
        %v1203 = vpack.c.bf16 %v1158, %v1157
        %v1204 = vpack.c.bf16 %v1160, %v1159
        %v1205 = vpack.c.bf16 %v1162, %v1161
        %v1206 = vpack.c.bf16 %v1164, %v1163
        %v1207 = vpack.c.bf16 %v1166, %v1165
        %v1208 = vpack.c.bf16 %v1168, %v1167
        %v1225 = vunpack.c.l.b16 %v1185
        %v1226 = vunpack.c.l.b16 %v1186
        %v1227 = vunpack.c.l.b16 %v1187
        %v1228 = vunpack.c.l.b16 %v1188
        %v1229 = vunpack.c.l.b16 %v1189
        %v1230 = vunpack.c.l.b16 %v1190
        %v1231 = vunpack.c.l.b16 %v1191
        %v1232 = vunpack.c.l.b16 %v1192
        %v1233 = vunpack.c.l.b16 %v1193
        %v1234 = vunpack.c.l.b16 %v1194
        %v1235 = vunpack.c.l.b16 %v1195
        %v1236 = vunpack.c.l.b16 %v1196
        %v1237 = vunpack.c.l.b16 %v1197
        %v1238 = vunpack.c.l.b16 %v1198
        %v1239 = vunpack.c.l.b16 %v1199
        %v1240 = vunpack.c.l.b16 %v1200
        %v1241 = vpack.c.b16 %v1226, %v1225
        %v1242 = vpack.c.b16 %v1228, %v1227
        %v1243 = vpack.c.b16 %v1230, %v1229
        %v1244 = vpack.c.b16 %v1232, %v1231
        %v1245 = vpack.c.b16 %v1234, %v1233
        %v1246 = vpack.c.b16 %v1236, %v1235
        %v1247 = vpack.c.b16 %v1238, %v1237
        %v1248 = vpack.c.b16 %v1240, %v1239
        %1257 = vmatpush.bf16.msra.mxu0 %v1208
        %1258 = vmatpush.bf16.msra.mxu0 %v1207
        %1259 = vmatpush.bf16.msra.mxu0 %v1206
        %1260 = vmatpush.bf16.msra.mxu0 %v1205
        %1261 = vmatpush.bf16.msra.mxu0 %v1204
        %1262 = vmatpush.bf16.msra.mxu0 %v1203
        %1263 = vmatpush.bf16.msra.mxu0 %v1202
        %1264 = vmatpush.bf16.msra.mxu0 %v1201
        %1265 = vmatmul.bf16.gmra.mxu0 %v1241
        %v1266 = vpop.f32.mrf.mxu0
        %v1267 = vadd.f32 0.0, %v1266
        %v1268 = vpop.f32.mrf.mxu0
        %v1269 = vadd.f32 0.0, %v1268
        %1270 = vmatmul.bf16.gmra.mxu0 %v1242
        %v1271 = vpop.f32.mrf.mxu0
        %v1272 = vadd.f32 0.0, %v1271
        %v1273 = vpop.f32.mrf.mxu0
        %v1274 = vadd.f32 0.0, %v1273
        %1275 = vmatmul.bf16.gmra.mxu0 %v1243
        %v1276 = vpop.f32.mrf.mxu0
        %v1277 = vadd.f32 0.0, %v1276
        %v1278 = vpop.f32.mrf.mxu0
        %v1279 = vadd.f32 0.0, %v1278
        %1280 = vmatmul.bf16.gmra.mxu0 %v1244
        %v1281 = vpop.f32.mrf.mxu0
        %v1282 = vadd.f32 0.0, %v1281
        %v1283 = vpop.f32.mrf.mxu0
        %v1284 = vadd.f32 0.0, %v1283
        %1285 = vmatmul.bf16.gmra.mxu0 %v1245
        %v1286 = vpop.f32.mrf.mxu0
        %v1287 = vadd.f32 0.0, %v1286
        %v1288 = vpop.f32.mrf.mxu0
        %v1289 = vadd.f32 0.0, %v1288
        %1290 = vmatmul.bf16.gmra.mxu0 %v1246
        %v1291 = vpop.f32.mrf.mxu0
        %v1292 = vadd.f32 0.0, %v1291
        %v1293 = vpop.f32.mrf.mxu0
        %v1294 = vadd.f32 0.0, %v1293
        %1295 = vmatmul.bf16.gmra.mxu0 %v1247
        %v1296 = vpop.f32.mrf.mxu0
        %v1297 = vadd.f32 0.0, %v1296
        %v1298 = vpop.f32.mrf.mxu0
        %v1299 = vadd.f32 0.0, %v1298
        %1300 = vmatmul.bf16.gmra.mxu0 %v1248
        %v1301 = vpop.f32.mrf.mxu0
        %v1302 = vadd.f32 0.0, %v1301
        %v1303 = vpop.f32.mrf.mxu0
        %v1304 = vadd.f32 0.0, %v1303
        %1305 = vdwg.mxu0
        %v1306 = vadd.f32 %v1169, %v1267
        %v1307 = vadd.f32 %v1170, %v1269
        %v1308 = vadd.f32 %v1171, %v1272
        %v1309 = vadd.f32 %v1172, %v1274
        %v1310 = vadd.f32 %v1173, %v1277
        %v1311 = vadd.f32 %v1174, %v1279
        %v1312 = vadd.f32 %v1175, %v1282
        %v1313 = vadd.f32 %v1176, %v1284
        %v1314 = vadd.f32 %v1177, %v1287
        %v1315 = vadd.f32 %v1178, %v1289
        %v1316 = vadd.f32 %v1179, %v1292
        %v1317 = vadd.f32 %v1180, %v1294
        %v1318 = vadd.f32 %v1181, %v1297
        %v1319 = vadd.f32 %v1182, %v1299
        %v1320 = vadd.f32 %v1183, %v1302
        %v1321 = vadd.f32 %v1184, %v1304
        %1322 = vst [vmem:[#allocation4] sm:$0xff] %v1306
        %1323 = vst [vmem:[#allocation4 + $0x8] sm:$0xff] %v1307
        %1324 = vst [vmem:[#allocation4 + $0x10] sm:$0xff] %v1308
        %1325 = vst [vmem:[#allocation4 + $0x18] sm:$0xff] %v1309
        %1326 = vst [vmem:[#allocation4 + $0x20] sm:$0xff] %v1310
        %1327 = vst [vmem:[#allocation4 + $0x28] sm:$0xff] %v1311
        %1328 = vst [vmem:[#allocation4 + $0x30] sm:$0xff] %v1312
        %1329 = vst [vmem:[#allocation4 + $0x38] sm:$0xff] %v1313
        %1330 = vst [vmem:[#allocation4 + $0x40] sm:$0xff] %v1314
        %1331 = vst [vmem:[#allocation4 + $0x48] sm:$0xff] %v1315
        %1332 = vst [vmem:[#allocation4 + $0x50] sm:$0xff] %v1316
        %1333 = vst [vmem:[#allocation4 + $0x58] sm:$0xff] %v1317
        %1334 = vst [vmem:[#allocation4 + $0x60] sm:$0xff] %v1318
        %1335 = vst [vmem:[#allocation4 + $0x68] sm:$0xff] %v1319
        %1336 = vst [vmem:[#allocation4 + $0x70] sm:$0xff] %v1320
        %1337 = vst [vmem:[#allocation4 + $0x78] sm:$0xff] %v1321
        %p1338 = scmp.eq.s32.totalorder %s49, 1
        // Predicated region
        $region125: #{tpu_custom_call.1} parent=71 // pred_check
          %p1339 = pneg %p1338
        $region126: #{tpu_custom_call.1} parent=71 // pred_check_branch
          %1341 = sbr.rel (%p1339) target = $region128
        $region127: #{tpu_custom_call.1} parent=71 // pred_region
          %v1342 = vld [vmem:[#allocation2] sm:$0xff]
          %v1343 = vld [vmem:[#allocation2 + $0x8] sm:$0xff]
          %v1344 = vld [vmem:[#allocation2 + $0x10] sm:$0xff]
          %v1345 = vld [vmem:[#allocation2 + $0x18] sm:$0xff]
          %v1346 = vld [vmem:[#allocation2 + $0x20] sm:$0xff]
          %v1347 = vld [vmem:[#allocation2 + $0x28] sm:$0xff]
          %v1348 = vld [vmem:[#allocation2 + $0x30] sm:$0xff]
          %v1349 = vld [vmem:[#allocation2 + $0x38] sm:$0xff]
          %v1350 = vld [vmem:[#allocation2 + $0x40] sm:$0xff]
          %v1351 = vld [vmem:[#allocation2 + $0x48] sm:$0xff]
          %v1352 = vld [vmem:[#allocation2 + $0x50] sm:$0xff]
          %v1353 = vld [vmem:[#allocation2 + $0x58] sm:$0xff]
          %v1354 = vld [vmem:[#allocation2 + $0x60] sm:$0xff]
          %v1355 = vld [vmem:[#allocation2 + $0x68] sm:$0xff]
          %v1356 = vld [vmem:[#allocation2 + $0x70] sm:$0xff]
          %v1357 = vld [vmem:[#allocation2 + $0x78] sm:$0xff]
          %v1358 = vld [vmem:[#allocation4] sm:$0xff]
          %v1359 = vld [vmem:[#allocation4 + $0x8] sm:$0xff]
          %v1360 = vld [vmem:[#allocation4 + $0x10] sm:$0xff]
          %v1361 = vld [vmem:[#allocation4 + $0x18] sm:$0xff]
          %v1362 = vld [vmem:[#allocation4 + $0x20] sm:$0xff]
          %v1363 = vld [vmem:[#allocation4 + $0x28] sm:$0xff]
          %v1364 = vld [vmem:[#allocation4 + $0x30] sm:$0xff]
          %v1365 = vld [vmem:[#allocation4 + $0x38] sm:$0xff]
          %v1366 = vld [vmem:[#allocation4 + $0x40] sm:$0xff]
          %v1367 = vld [vmem:[#allocation4 + $0x48] sm:$0xff]
          %v1368 = vld [vmem:[#allocation4 + $0x50] sm:$0xff]
          %v1369 = vld [vmem:[#allocation4 + $0x58] sm:$0xff]
          %v1370 = vld [vmem:[#allocation4 + $0x60] sm:$0xff]
          %v1371 = vld [vmem:[#allocation4 + $0x68] sm:$0xff]
          %v1372 = vld [vmem:[#allocation4 + $0x70] sm:$0xff]
          %v1373 = vld [vmem:[#allocation4 + $0x78] sm:$0xff]
          %v1374 = vadd.f32 %v1342, %v1358
          %v1375 = vadd.f32 %v1343, %v1359
          %v1376 = vadd.f32 %v1344, %v1360
          %v1377 = vadd.f32 %v1345, %v1361
          %v1378 = vadd.f32 %v1346, %v1362
          %v1379 = vadd.f32 %v1347, %v1363
          %v1380 = vadd.f32 %v1348, %v1364
          %v1381 = vadd.f32 %v1349, %v1365
          %v1382 = vadd.f32 %v1350, %v1366
          %v1383 = vadd.f32 %v1351, %v1367
          %v1384 = vadd.f32 %v1352, %v1368
          %v1385 = vadd.f32 %v1353, %v1369
          %v1386 = vadd.f32 %v1354, %v1370
          %v1387 = vadd.f32 %v1355, %v1371
          %v1388 = vadd.f32 %v1356, %v1372
          %v1389 = vadd.f32 %v1357, %v1373
          %v1390 = vld [vmem:[%s712] sm:$0xff]
          %v1391 = vld [vmem:[%s712 + $0x8] sm:$0xff]
          %v1392 = vld [vmem:[%s712 + $0x10] sm:$0xff]
          %v1393 = vld [vmem:[%s712 + $0x18] sm:$0xff]
          %v1394 = vld [vmem:[%s712 + $0x20] sm:$0xff]
          %v1395 = vld [vmem:[%s712 + $0x28] sm:$0xff]
          %v1396 = vld [vmem:[%s712 + $0x30] sm:$0xff]
          %v1397 = vld [vmem:[%s712 + $0x38] sm:$0xff]
          %v1398 = vld [vmem:[%s712 + $0x40] sm:$0xff]
          %v1399 = vld [vmem:[%s712 + $0x48] sm:$0xff]
          %v1400 = vld [vmem:[%s712 + $0x50] sm:$0xff]
          %v1401 = vld [vmem:[%s712 + $0x58] sm:$0xff]
          %v1402 = vld [vmem:[%s712 + $0x60] sm:$0xff]
          %v1403 = vld [vmem:[%s712 + $0x68] sm:$0xff]
          %v1404 = vld [vmem:[%s712 + $0x70] sm:$0xff]
          %v1405 = vld [vmem:[%s712 + $0x78] sm:$0xff]
          %v1406 = vld [vmem:[%s712 + $0x80] sm:$0xff]
          %v1407 = vld [vmem:[%s712 + $0x88] sm:$0xff]
          %v1408 = vld [vmem:[%s712 + $0x90] sm:$0xff]
          %v1409 = vld [vmem:[%s712 + $0x98] sm:$0xff]
          %v1410 = vld [vmem:[%s712 + $0xa0] sm:$0xff]
          %v1411 = vld [vmem:[%s712 + $0xa8] sm:$0xff]
          %v1412 = vld [vmem:[%s712 + $0xb0] sm:$0xff]
          %v1413 = vld [vmem:[%s712 + $0xb8] sm:$0xff]
          %v1414 = vld [vmem:[%s712 + $0xc0] sm:$0xff]
          %v1415 = vld [vmem:[%s712 + $0xc8] sm:$0xff]
          %v1416 = vld [vmem:[%s712 + $0xd0] sm:$0xff]
          %v1417 = vld [vmem:[%s712 + $0xd8] sm:$0xff]
          %v1418 = vld [vmem:[%s712 + $0xe0] sm:$0xff]
          %v1419 = vld [vmem:[%s712 + $0xe8] sm:$0xff]
          %v1420 = vld [vmem:[%s712 + $0xf0] sm:$0xff]
          %v1421 = vld [vmem:[%s712 + $0xf8] sm:$0xff]
          %v1422 = vld [vmem:[%s722] sm:$0x3]
          %v1424 = vperm.slane %v1422, 0
          %v1425 = vperm.slane %v1422, 1
          %1428 = vmatpush.msra.mxu0 %v1420
          %1429 = vmatpush.msra.mxu0 %v1418
          %1430 = vmatpush.msra.mxu0 %v1416
          %1431 = vmatpush.msra.mxu0 %v1414
          %1432 = vmatpush.msra.mxu0 %v1412
          %1433 = vmatpush.msra.mxu0 %v1410
          %1434 = vmatpush.msra.mxu0 %v1408
          %1435 = vmatpush.msra.mxu0 %v1406
          %1436 = vmatpush.msra.mxu0 %v1404
          %1437 = vmatpush.msra.mxu0 %v1402
          %1438 = vmatpush.msra.mxu0 %v1400
          %1439 = vmatpush.msra.mxu0 %v1398
          %1440 = vmatpush.msra.mxu0 %v1396
          %1441 = vmatpush.msra.mxu0 %v1394
          %1442 = vmatpush.msra.mxu0 %v1392
          %1443 = vmatpush.msra.mxu0 %v1390
          %1444 = vmatmul.f32.gmra.mxu0 %v1374
          %v1445 = vpop.f32.mrf.mxu0
          %v1446 = vadd.f32 %v1424, %v1445
          %1447 = vmatmul.f32.gmra.mxu0 %v1375
          %v1448 = vpop.f32.mrf.mxu0
          %v1449 = vadd.f32 %v1424, %v1448
          %1450 = vmatmul.f32.gmra.mxu0 %v1376
          %v1451 = vpop.f32.mrf.mxu0
          %v1452 = vadd.f32 %v1424, %v1451
          %1453 = vmatmul.f32.gmra.mxu0 %v1377
          %v1454 = vpop.f32.mrf.mxu0
          %v1455 = vadd.f32 %v1424, %v1454
          %1456 = vmatmul.f32.gmra.mxu0 %v1378
          %v1457 = vpop.f32.mrf.mxu0
          %v1458 = vadd.f32 %v1424, %v1457
          %1459 = vmatmul.f32.gmra.mxu0 %v1379
          %v1460 = vpop.f32.mrf.mxu0
          %v1461 = vadd.f32 %v1424, %v1460
          %1462 = vmatmul.f32.gmra.mxu0 %v1380
          %v1463 = vpop.f32.mrf.mxu0
          %v1464 = vadd.f32 %v1424, %v1463
          %1465 = vmatmul.f32.gmra.mxu0 %v1381
          %v1466 = vpop.f32.mrf.mxu0
          %v1467 = vadd.f32 %v1424, %v1466
          %1468 = vmatmul.f32.gmra.mxu0 %v1382
          %v1469 = vpop.f32.mrf.mxu0
          %v1470 = vadd.f32 %v1424, %v1469
          %1471 = vmatmul.f32.gmra.mxu0 %v1383
          %v1472 = vpop.f32.mrf.mxu0
          %v1473 = vadd.f32 %v1424, %v1472
          %1474 = vmatmul.f32.gmra.mxu0 %v1384
          %v1475 = vpop.f32.mrf.mxu0
          %v1476 = vadd.f32 %v1424, %v1475
          %1477 = vmatmul.f32.gmra.mxu0 %v1385
          %v1478 = vpop.f32.mrf.mxu0
          %v1479 = vadd.f32 %v1424, %v1478
          %1480 = vmatmul.f32.gmra.mxu0 %v1386
          %v1481 = vpop.f32.mrf.mxu0
          %v1482 = vadd.f32 %v1424, %v1481
          %1483 = vmatmul.f32.gmra.mxu0 %v1387
          %v1484 = vpop.f32.mrf.mxu0
          %v1485 = vadd.f32 %v1424, %v1484
          %1486 = vmatmul.f32.gmra.mxu0 %v1388
          %v1487 = vpop.f32.mrf.mxu0
          %v1488 = vadd.f32 %v1424, %v1487
          %1489 = vmatmul.f32.gmra.mxu0 %v1389
          %v1490 = vpop.f32.mrf.mxu0
          %v1491 = vadd.f32 %v1424, %v1490
          %1492 = vdwg.mxu0
          %1493 = vmatpush.msra.mxu0 %v1421
          %1494 = vmatpush.msra.mxu0 %v1419
          %1495 = vmatpush.msra.mxu0 %v1417
          %1496 = vmatpush.msra.mxu0 %v1415
          %1497 = vmatpush.msra.mxu0 %v1413
          %1498 = vmatpush.msra.mxu0 %v1411
          %1499 = vmatpush.msra.mxu0 %v1409
          %1500 = vmatpush.msra.mxu0 %v1407
          %1501 = vmatpush.msra.mxu0 %v1405
          %1502 = vmatpush.msra.mxu0 %v1403
          %1503 = vmatpush.msra.mxu0 %v1401
          %1504 = vmatpush.msra.mxu0 %v1399
          %1505 = vmatpush.msra.mxu0 %v1397
          %1506 = vmatpush.msra.mxu0 %v1395
          %1507 = vmatpush.msra.mxu0 %v1393
          %1508 = vmatpush.msra.mxu0 %v1391
          %1509 = vmatmul.f32.gmra.mxu0 %v1374
          %v1510 = vpop.f32.mrf.mxu0
          %v1511 = vadd.f32 %v1425, %v1510
          %1512 = vmatmul.f32.gmra.mxu0 %v1375
          %v1513 = vpop.f32.mrf.mxu0
          %v1514 = vadd.f32 %v1425, %v1513
          %1515 = vmatmul.f32.gmra.mxu0 %v1376
          %v1516 = vpop.f32.mrf.mxu0
          %v1517 = vadd.f32 %v1425, %v1516
          %1518 = vmatmul.f32.gmra.mxu0 %v1377
          %v1519 = vpop.f32.mrf.mxu0
          %v1520 = vadd.f32 %v1425, %v1519
          %1521 = vmatmul.f32.gmra.mxu0 %v1378
          %v1522 = vpop.f32.mrf.mxu0
          %v1523 = vadd.f32 %v1425, %v1522
          %1524 = vmatmul.f32.gmra.mxu0 %v1379
          %v1525 = vpop.f32.mrf.mxu0
          %v1526 = vadd.f32 %v1425, %v1525
          %1527 = vmatmul.f32.gmra.mxu0 %v1380
          %v1528 = vpop.f32.mrf.mxu0
          %v1529 = vadd.f32 %v1425, %v1528
          %1530 = vmatmul.f32.gmra.mxu0 %v1381
          %v1531 = vpop.f32.mrf.mxu0
          %v1532 = vadd.f32 %v1425, %v1531
          %1533 = vmatmul.f32.gmra.mxu0 %v1382
          %v1534 = vpop.f32.mrf.mxu0
          %v1535 = vadd.f32 %v1425, %v1534
          %1536 = vmatmul.f32.gmra.mxu0 %v1383
          %v1537 = vpop.f32.mrf.mxu0
          %v1538 = vadd.f32 %v1425, %v1537
          %1539 = vmatmul.f32.gmra.mxu0 %v1384
          %v1540 = vpop.f32.mrf.mxu0
          %v1541 = vadd.f32 %v1425, %v1540
          %1542 = vmatmul.f32.gmra.mxu0 %v1385
          %v1543 = vpop.f32.mrf.mxu0
          %v1544 = vadd.f32 %v1425, %v1543
          %1545 = vmatmul.f32.gmra.mxu0 %v1386
          %v1546 = vpop.f32.mrf.mxu0
          %v1547 = vadd.f32 %v1425, %v1546
          %1548 = vmatmul.f32.gmra.mxu0 %v1387
          %v1549 = vpop.f32.mrf.mxu0
          %v1550 = vadd.f32 %v1425, %v1549
          %1551 = vmatmul.f32.gmra.mxu0 %v1388
          %v1552 = vpop.f32.mrf.mxu0
          %v1553 = vadd.f32 %v1425, %v1552
          %1554 = vmatmul.f32.gmra.mxu0 %v1389
          %v1555 = vpop.f32.mrf.mxu0
          %v1556 = vadd.f32 %v1425, %v1555
          %1557 = vdwg.mxu0
          %v1558 = vadd.f32 %v1446, %v1449
          %v1559 = vadd.f32 %v1558, %v1452
          %v1560 = vadd.f32 %v1559, %v1455
          %v1561 = vadd.f32 %v1560, %v1458
          %v1562 = vadd.f32 %v1561, %v1461
          %v1563 = vadd.f32 %v1562, %v1464
          %v1564 = vadd.f32 %v1563, %v1467
          %v1565 = vadd.f32 %v1564, %v1470
          %v1566 = vadd.f32 %v1565, %v1473
          %v1567 = vadd.f32 %v1566, %v1476
          %v1568 = vadd.f32 %v1567, %v1479
          %v1569 = vadd.f32 %v1568, %v1482
          %v1570 = vadd.f32 %v1569, %v1485
          %v1571 = vadd.f32 %v1570, %v1488
          %v1572 = vadd.f32 %v1571, %v1491
          %v1573 = vrot.slane %v1572, 4
          %v1574 = vadd.f32 %v1572, %v1573
          %v1575 = vrot.slane %v1574, 2
          %v1576 = vadd.f32 %v1574, %v1575
          %v1577 = vrot.slane %v1576, 1
          %v1578 = vadd.f32 %v1576, %v1577
          %v1579 = vadd.f32 %v1511, %v1514
          %v1580 = vadd.f32 %v1579, %v1517
          %v1581 = vadd.f32 %v1580, %v1520
          %v1582 = vadd.f32 %v1581, %v1523
          %v1583 = vadd.f32 %v1582, %v1526
          %v1584 = vadd.f32 %v1583, %v1529
          %v1585 = vadd.f32 %v1584, %v1532
          %v1586 = vadd.f32 %v1585, %v1535
          %v1587 = vadd.f32 %v1586, %v1538
          %v1588 = vadd.f32 %v1587, %v1541
          %v1589 = vadd.f32 %v1588, %v1544
          %v1590 = vadd.f32 %v1589, %v1547
          %v1591 = vadd.f32 %v1590, %v1550
          %v1592 = vadd.f32 %v1591, %v1553
          %v1593 = vadd.f32 %v1592, %v1556
          %v1594 = vrot.slane %v1593, 4
          %v1595 = vadd.f32 %v1593, %v1594
          %v1596 = vrot.slane %v1595, 2
          %v1597 = vadd.f32 %v1595, %v1596
          %v1598 = vrot.slane %v1597, 1
          %v1599 = vadd.f32 %v1597, %v1598
          %v1600 = vmul.f32 %v1446, %v1446
          %v1601 = vmul.f32 %v1511, %v1511
          %v1602 = vmul.f32 %v1449, %v1449
          %v1603 = vmul.f32 %v1514, %v1514
          %v1604 = vmul.f32 %v1452, %v1452
          %v1605 = vmul.f32 %v1517, %v1517
          %v1606 = vmul.f32 %v1455, %v1455
          %v1607 = vmul.f32 %v1520, %v1520
          %v1608 = vmul.f32 %v1458, %v1458
          %v1609 = vmul.f32 %v1523, %v1523
          %v1610 = vmul.f32 %v1461, %v1461
          %v1611 = vmul.f32 %v1526, %v1526
          %v1612 = vmul.f32 %v1464, %v1464
          %v1613 = vmul.f32 %v1529, %v1529
          %v1614 = vmul.f32 %v1467, %v1467
          %v1615 = vmul.f32 %v1532, %v1532
          %v1616 = vmul.f32 %v1470, %v1470
          %v1617 = vmul.f32 %v1535, %v1535
          %v1618 = vmul.f32 %v1473, %v1473
          %v1619 = vmul.f32 %v1538, %v1538
          %v1620 = vmul.f32 %v1476, %v1476
          %v1621 = vmul.f32 %v1541, %v1541
          %v1622 = vmul.f32 %v1479, %v1479
          %v1623 = vmul.f32 %v1544, %v1544
          %v1624 = vmul.f32 %v1482, %v1482
          %v1625 = vmul.f32 %v1547, %v1547
          %v1626 = vmul.f32 %v1485, %v1485
          %v1627 = vmul.f32 %v1550, %v1550
          %v1628 = vmul.f32 %v1488, %v1488
          %v1629 = vmul.f32 %v1553, %v1553
          %v1630 = vmul.f32 %v1491, %v1491
          %v1631 = vmul.f32 %v1556, %v1556
          %v1632 = vadd.f32 %v1600, %v1602
          %v1633 = vadd.f32 %v1632, %v1604
          %v1634 = vadd.f32 %v1633, %v1606
          %v1635 = vadd.f32 %v1634, %v1608
          %v1636 = vadd.f32 %v1635, %v1610
          %v1637 = vadd.f32 %v1636, %v1612
          %v1638 = vadd.f32 %v1637, %v1614
          %v1639 = vadd.f32 %v1638, %v1616
          %v1640 = vadd.f32 %v1639, %v1618
          %v1641 = vadd.f32 %v1640, %v1620
          %v1642 = vadd.f32 %v1641, %v1622
          %v1643 = vadd.f32 %v1642, %v1624
          %v1644 = vadd.f32 %v1643, %v1626
          %v1645 = vadd.f32 %v1644, %v1628
          %v1646 = vadd.f32 %v1645, %v1630
          %v1647 = vrot.slane %v1646, 4
          %v1648 = vadd.f32 %v1646, %v1647
          %v1649 = vrot.slane %v1648, 2
          %v1650 = vadd.f32 %v1648, %v1649
          %v1651 = vrot.slane %v1650, 1
          %v1652 = vadd.f32 %v1650, %v1651
          %v1653 = vadd.f32 %v1601, %v1603
          %v1654 = vadd.f32 %v1653, %v1605
          %v1655 = vadd.f32 %v1654, %v1607
          %v1656 = vadd.f32 %v1655, %v1609
          %v1657 = vadd.f32 %v1656, %v1611
          %v1658 = vadd.f32 %v1657, %v1613
          %v1659 = vadd.f32 %v1658, %v1615
          %v1660 = vadd.f32 %v1659, %v1617
          %v1661 = vadd.f32 %v1660, %v1619
          %v1662 = vadd.f32 %v1661, %v1621
          %v1663 = vadd.f32 %v1662, %v1623
          %v1664 = vadd.f32 %v1663, %v1625
          %v1665 = vadd.f32 %v1664, %v1627
          %v1666 = vadd.f32 %v1665, %v1629
          %v1667 = vadd.f32 %v1666, %v1631
          %v1668 = vrot.slane %v1667, 4
          %v1669 = vadd.f32 %v1667, %v1668
          %v1670 = vrot.slane %v1669, 2
          %v1671 = vadd.f32 %v1669, %v1670
          %v1672 = vrot.slane %v1671, 1
          %v1673 = vadd.f32 %v1671, %v1672
          %v1674 = vmul.f32 %v1578, 0.0078125
          %v1675 = vmul.f32 %v1599, 0.0078125
          %v1676 = vmul.f32 %v1652, 0.0078125
          %v1677 = vmul.f32 %v1673, 0.0078125
          %v1678 = vmul.f32 %v1674, %v1674
          %v1679 = vmul.f32 %v1675, %v1675
          %v1680 = vsub.f32 %v1676, %v1678
          %v1681 = vsub.f32 %v1677, %v1679
          %v1682 = vsub.f32 %v1446, %v1674
          %v1683 = vsub.f32 %v1511, %v1675
          %v1684 = vsub.f32 %v1449, %v1674
          %v1685 = vsub.f32 %v1514, %v1675
          %v1686 = vsub.f32 %v1452, %v1674
          %v1687 = vsub.f32 %v1517, %v1675
          %v1688 = vsub.f32 %v1455, %v1674
          %v1689 = vsub.f32 %v1520, %v1675
          %v1690 = vsub.f32 %v1458, %v1674
          %v1691 = vsub.f32 %v1523, %v1675
          %v1692 = vsub.f32 %v1461, %v1674
          %v1693 = vsub.f32 %v1526, %v1675
          %v1694 = vsub.f32 %v1464, %v1674
          %v1695 = vsub.f32 %v1529, %v1675
          %v1696 = vsub.f32 %v1467, %v1674
          %v1697 = vsub.f32 %v1532, %v1675
          %v1698 = vsub.f32 %v1470, %v1674
          %v1699 = vsub.f32 %v1535, %v1675
          %v1700 = vsub.f32 %v1473, %v1674
          %v1701 = vsub.f32 %v1538, %v1675
          %v1702 = vsub.f32 %v1476, %v1674
          %v1703 = vsub.f32 %v1541, %v1675
          %v1704 = vsub.f32 %v1479, %v1674
          %v1705 = vsub.f32 %v1544, %v1675
          %v1706 = vsub.f32 %v1482, %v1674
          %v1707 = vsub.f32 %v1547, %v1675
          %v1708 = vsub.f32 %v1485, %v1674
          %v1709 = vsub.f32 %v1550, %v1675
          %v1710 = vsub.f32 %v1488, %v1674
          %v1711 = vsub.f32 %v1553, %v1675
          %v1712 = vsub.f32 %v1491, %v1674
          %v1713 = vsub.f32 %v1556, %v1675
          %v1714 = vadd.f32 %v1680, 1e-05
          %v1715 = vadd.f32 %v1681, 1e-05
          %v1716 = vrsqrt.pop %v1714
          %v1717 = vmul.f32 %v1716, %v1714
          %v1718 = vmul.f32 %v1717, %v1716
          %v1719 = vmul.f32 0.5, %v1718
          %v1720 = vsub.f32 1.5, %v1719
          %v1721 = vmul.f32 %v1716, %v1720
          %vm1722 = vweird.f32 %v1714
          %vm1723 = vweird.f32 %v1716
          %vm1724 = vmor %vm1722, %vm1723
          %v1725 = vsel %vm1724, %v1716, %v1721
          %v1726 = vrsqrt.pop %v1715
          %v1727 = vmul.f32 %v1726, %v1715
          %v1728 = vmul.f32 %v1727, %v1726
          %v1729 = vmul.f32 0.5, %v1728
          %v1730 = vsub.f32 1.5, %v1729
          %v1731 = vmul.f32 %v1726, %v1730
          %vm1732 = vweird.f32 %v1715
          %vm1733 = vweird.f32 %v1726
          %vm1734 = vmor %vm1732, %vm1733
          %v1735 = vsel %vm1734, %v1726, %v1731
          %v1736 = vmul.f32 %v1682, %v1725
          %v1737 = vmul.f32 %v1683, %v1735
          %v1738 = vmul.f32 %v1684, %v1725
          %v1739 = vmul.f32 %v1685, %v1735
          %v1740 = vmul.f32 %v1686, %v1725
          %v1741 = vmul.f32 %v1687, %v1735
          %v1742 = vmul.f32 %v1688, %v1725
          %v1743 = vmul.f32 %v1689, %v1735
          %v1744 = vmul.f32 %v1690, %v1725
          %v1745 = vmul.f32 %v1691, %v1735
          %v1746 = vmul.f32 %v1692, %v1725
          %v1747 = vmul.f32 %v1693, %v1735
          %v1748 = vmul.f32 %v1694, %v1725
          %v1749 = vmul.f32 %v1695, %v1735
          %v1750 = vmul.f32 %v1696, %v1725
          %v1751 = vmul.f32 %v1697, %v1735
          %v1752 = vmul.f32 %v1698, %v1725
          %v1753 = vmul.f32 %v1699, %v1735
          %v1754 = vmul.f32 %v1700, %v1725
          %v1755 = vmul.f32 %v1701, %v1735
          %v1756 = vmul.f32 %v1702, %v1725
          %v1757 = vmul.f32 %v1703, %v1735
          %v1758 = vmul.f32 %v1704, %v1725
          %v1759 = vmul.f32 %v1705, %v1735
          %v1760 = vmul.f32 %v1706, %v1725
          %v1761 = vmul.f32 %v1707, %v1735
          %v1762 = vmul.f32 %v1708, %v1725
          %v1763 = vmul.f32 %v1709, %v1735
          %v1764 = vmul.f32 %v1710, %v1725
          %v1765 = vmul.f32 %v1711, %v1735
          %v1766 = vmul.f32 %v1712, %v1725
          %v1767 = vmul.f32 %v1713, %v1735
          %v1768 = vld [vmem:[%s732] sm:$0x3]
          %v1770 = vperm.slane %v1768, 0
          %v1771 = vperm.slane %v1768, 1
          %v1774 = vmul.f32 %v1736, %v1770
          %v1775 = vmul.f32 %v1737, %v1771
          %v1776 = vmul.f32 %v1738, %v1770
          %v1777 = vmul.f32 %v1739, %v1771
          %v1778 = vmul.f32 %v1740, %v1770
          %v1779 = vmul.f32 %v1741, %v1771
          %v1780 = vmul.f32 %v1742, %v1770
          %v1781 = vmul.f32 %v1743, %v1771
          %v1782 = vmul.f32 %v1744, %v1770
          %v1783 = vmul.f32 %v1745, %v1771
          %v1784 = vmul.f32 %v1746, %v1770
          %v1785 = vmul.f32 %v1747, %v1771
          %v1786 = vmul.f32 %v1748, %v1770
          %v1787 = vmul.f32 %v1749, %v1771
          %v1788 = vmul.f32 %v1750, %v1770
          %v1789 = vmul.f32 %v1751, %v1771
          %v1790 = vmul.f32 %v1752, %v1770
          %v1791 = vmul.f32 %v1753, %v1771
          %v1792 = vmul.f32 %v1754, %v1770
          %v1793 = vmul.f32 %v1755, %v1771
          %v1794 = vmul.f32 %v1756, %v1770
          %v1795 = vmul.f32 %v1757, %v1771
          %v1796 = vmul.f32 %v1758, %v1770
          %v1797 = vmul.f32 %v1759, %v1771
          %v1798 = vmul.f32 %v1760, %v1770
          %v1799 = vmul.f32 %v1761, %v1771
          %v1800 = vmul.f32 %v1762, %v1770
          %v1801 = vmul.f32 %v1763, %v1771
          %v1802 = vmul.f32 %v1764, %v1770
          %v1803 = vmul.f32 %v1765, %v1771
          %v1804 = vmul.f32 %v1766, %v1770
          %v1805 = vmul.f32 %v1767, %v1771
          %v1806 = vld [vmem:[%s742] sm:$0x3]
          %v1808 = vperm.slane %v1806, 0
          %v1809 = vperm.slane %v1806, 1
          %v1812 = vadd.f32 %v1774, %v1808
          %v1813 = vadd.f32 %v1775, %v1809
          %v1814 = vadd.f32 %v1776, %v1808
          %v1815 = vadd.f32 %v1777, %v1809
          %v1816 = vadd.f32 %v1778, %v1808
          %v1817 = vadd.f32 %v1779, %v1809
          %v1818 = vadd.f32 %v1780, %v1808
          %v1819 = vadd.f32 %v1781, %v1809
          %v1820 = vadd.f32 %v1782, %v1808
          %v1821 = vadd.f32 %v1783, %v1809
          %v1822 = vadd.f32 %v1784, %v1808
          %v1823 = vadd.f32 %v1785, %v1809
          %v1824 = vadd.f32 %v1786, %v1808
          %v1825 = vadd.f32 %v1787, %v1809
          %v1826 = vadd.f32 %v1788, %v1808
          %v1827 = vadd.f32 %v1789, %v1809
          %v1828 = vadd.f32 %v1790, %v1808
          %v1829 = vadd.f32 %v1791, %v1809
          %v1830 = vadd.f32 %v1792, %v1808
          %v1831 = vadd.f32 %v1793, %v1809
          %v1832 = vadd.f32 %v1794, %v1808
          %v1833 = vadd.f32 %v1795, %v1809
          %v1834 = vadd.f32 %v1796, %v1808
          %v1835 = vadd.f32 %v1797, %v1809
          %v1836 = vadd.f32 %v1798, %v1808
          %v1837 = vadd.f32 %v1799, %v1809
          %v1838 = vadd.f32 %v1800, %v1808
          %v1839 = vadd.f32 %v1801, %v1809
          %v1840 = vadd.f32 %v1802, %v1808
          %v1841 = vadd.f32 %v1803, %v1809
          %v1842 = vadd.f32 %v1804, %v1808
          %v1843 = vadd.f32 %v1805, %v1809
          %v1844 = vmax.f32 %v1812, 0.0
          %v1845 = vmax.f32 %v1813, 0.0
          %v1846 = vmax.f32 %v1814, 0.0
          %v1847 = vmax.f32 %v1815, 0.0
          %v1848 = vmax.f32 %v1816, 0.0
          %v1849 = vmax.f32 %v1817, 0.0
          %v1850 = vmax.f32 %v1818, 0.0
          %v1851 = vmax.f32 %v1819, 0.0
          %v1852 = vmax.f32 %v1820, 0.0
          %v1853 = vmax.f32 %v1821, 0.0
          %v1854 = vmax.f32 %v1822, 0.0
          %v1855 = vmax.f32 %v1823, 0.0
          %v1856 = vmax.f32 %v1824, 0.0
          %v1857 = vmax.f32 %v1825, 0.0
          %v1858 = vmax.f32 %v1826, 0.0
          %v1859 = vmax.f32 %v1827, 0.0
          %v1860 = vmax.f32 %v1828, 0.0
          %v1861 = vmax.f32 %v1829, 0.0
          %v1862 = vmax.f32 %v1830, 0.0
          %v1863 = vmax.f32 %v1831, 0.0
          %v1864 = vmax.f32 %v1832, 0.0
          %v1865 = vmax.f32 %v1833, 0.0
          %v1866 = vmax.f32 %v1834, 0.0
          %v1867 = vmax.f32 %v1835, 0.0
          %v1868 = vmax.f32 %v1836, 0.0
          %v1869 = vmax.f32 %v1837, 0.0
          %v1870 = vmax.f32 %v1838, 0.0
          %v1871 = vmax.f32 %v1839, 0.0
          %v1872 = vmax.f32 %v1840, 0.0
          %v1873 = vmax.f32 %v1841, 0.0
          %v1874 = vmax.f32 %v1842, 0.0
          %v1875 = vmax.f32 %v1843, 0.0
          %v1876 = vld [vmem:[%s752] sm:$0xff]
          %v1877 = vld [vmem:[%s752 + $0x8] sm:$0xff]
          %v1878 = vld [vmem:[%s752 + $0x10] sm:$0xff]
          %v1879 = vld [vmem:[%s752 + $0x18] sm:$0xff]
          %v1880 = vld [vmem:[%s752 + $0x20] sm:$0xff]
          %v1881 = vld [vmem:[%s752 + $0x28] sm:$0xff]
          %v1882 = vld [vmem:[%s752 + $0x30] sm:$0xff]
          %v1883 = vld [vmem:[%s752 + $0x38] sm:$0xff]
          %v1884 = vld [vmem:[%s752 + $0x40] sm:$0xff]
          %v1885 = vld [vmem:[%s752 + $0x48] sm:$0xff]
          %v1886 = vld [vmem:[%s752 + $0x50] sm:$0xff]
          %v1887 = vld [vmem:[%s752 + $0x58] sm:$0xff]
          %v1888 = vld [vmem:[%s752 + $0x60] sm:$0xff]
          %v1889 = vld [vmem:[%s752 + $0x68] sm:$0xff]
          %v1890 = vld [vmem:[%s752 + $0x70] sm:$0xff]
          %v1891 = vld [vmem:[%s752 + $0x78] sm:$0xff]
          %v1892 = vld [vmem:[%s752 + $0x80] sm:$0xff]
          %v1893 = vld [vmem:[%s752 + $0x88] sm:$0xff]
          %v1894 = vld [vmem:[%s752 + $0x90] sm:$0xff]
          %v1895 = vld [vmem:[%s752 + $0x98] sm:$0xff]
          %v1896 = vld [vmem:[%s752 + $0xa0] sm:$0xff]
          %v1897 = vld [vmem:[%s752 + $0xa8] sm:$0xff]
          %v1898 = vld [vmem:[%s752 + $0xb0] sm:$0xff]
          %v1899 = vld [vmem:[%s752 + $0xb8] sm:$0xff]
          %v1900 = vld [vmem:[%s752 + $0xc0] sm:$0xff]
          %v1901 = vld [vmem:[%s752 + $0xc8] sm:$0xff]
          %v1902 = vld [vmem:[%s752 + $0xd0] sm:$0xff]
          %v1903 = vld [vmem:[%s752 + $0xd8] sm:$0xff]
          %v1904 = vld [vmem:[%s752 + $0xe0] sm:$0xff]
          %v1905 = vld [vmem:[%s752 + $0xe8] sm:$0xff]
          %v1906 = vld [vmem:[%s752 + $0xf0] sm:$0xff]
          %v1907 = vld [vmem:[%s752 + $0xf8] sm:$0xff]
          %v1908 = vld [vmem:[%s851] sm:$0x1]
          %v1910 = vperm.slane %v1908, 0
          %1912 = vmatpush.msra.mxu0 %v1891
          %1913 = vmatpush.msra.mxu0 %v1890
          %1914 = vmatpush.msra.mxu0 %v1889
          %1915 = vmatpush.msra.mxu0 %v1888
          %1916 = vmatpush.msra.mxu0 %v1887
          %1917 = vmatpush.msra.mxu0 %v1886
          %1918 = vmatpush.msra.mxu0 %v1885
          %1919 = vmatpush.msra.mxu0 %v1884
          %1920 = vmatpush.msra.mxu0 %v1883
          %1921 = vmatpush.msra.mxu0 %v1882
          %1922 = vmatpush.msra.mxu0 %v1881
          %1923 = vmatpush.msra.mxu0 %v1880
          %1924 = vmatpush.msra.mxu0 %v1879
          %1925 = vmatpush.msra.mxu0 %v1878
          %1926 = vmatpush.msra.mxu0 %v1877
          %1927 = vmatpush.msra.mxu0 %v1876
          %1928 = vmatmul.f32.gmra.mxu0 %v1844
          %v1929 = vpop.f32.mrf.mxu0
          %v1930 = vadd.f32 %v1910, %v1929
          %1931 = vmatmul.f32.gmra.mxu0 %v1846
          %v1932 = vpop.f32.mrf.mxu0
          %v1933 = vadd.f32 %v1910, %v1932
          %1934 = vmatmul.f32.gmra.mxu0 %v1848
          %v1935 = vpop.f32.mrf.mxu0
          %v1936 = vadd.f32 %v1910, %v1935
          %1937 = vmatmul.f32.gmra.mxu0 %v1850
          %v1938 = vpop.f32.mrf.mxu0
          %v1939 = vadd.f32 %v1910, %v1938
          %1940 = vmatmul.f32.gmra.mxu0 %v1852
          %v1941 = vpop.f32.mrf.mxu0
          %v1942 = vadd.f32 %v1910, %v1941
          %1943 = vmatmul.f32.gmra.mxu0 %v1854
          %v1944 = vpop.f32.mrf.mxu0
          %v1945 = vadd.f32 %v1910, %v1944
          %1946 = vmatmul.f32.gmra.mxu0 %v1856
          %v1947 = vpop.f32.mrf.mxu0
          %v1948 = vadd.f32 %v1910, %v1947
          %1949 = vmatmul.f32.gmra.mxu0 %v1858
          %v1950 = vpop.f32.mrf.mxu0
          %v1951 = vadd.f32 %v1910, %v1950
          %1952 = vmatmul.f32.gmra.mxu0 %v1860
          %v1953 = vpop.f32.mrf.mxu0
          %v1954 = vadd.f32 %v1910, %v1953
          %1955 = vmatmul.f32.gmra.mxu0 %v1862
          %v1956 = vpop.f32.mrf.mxu0
          %v1957 = vadd.f32 %v1910, %v1956
          %1958 = vmatmul.f32.gmra.mxu0 %v1864
          %v1959 = vpop.f32.mrf.mxu0
          %v1960 = vadd.f32 %v1910, %v1959
          %1961 = vmatmul.f32.gmra.mxu0 %v1866
          %v1962 = vpop.f32.mrf.mxu0
          %v1963 = vadd.f32 %v1910, %v1962
          %1964 = vmatmul.f32.gmra.mxu0 %v1868
          %v1965 = vpop.f32.mrf.mxu0
          %v1966 = vadd.f32 %v1910, %v1965
          %1967 = vmatmul.f32.gmra.mxu0 %v1870
          %v1968 = vpop.f32.mrf.mxu0
          %v1969 = vadd.f32 %v1910, %v1968
          %1970 = vmatmul.f32.gmra.mxu0 %v1872
          %v1971 = vpop.f32.mrf.mxu0
          %v1972 = vadd.f32 %v1910, %v1971
          %1973 = vmatmul.f32.gmra.mxu0 %v1874
          %v1974 = vpop.f32.mrf.mxu0
          %v1975 = vadd.f32 %v1910, %v1974
          %1976 = vdwg.mxu0
          %1977 = vmatpush.msra.mxu0 %v1907
          %1978 = vmatpush.msra.mxu0 %v1906
          %1979 = vmatpush.msra.mxu0 %v1905
          %1980 = vmatpush.msra.mxu0 %v1904
          %1981 = vmatpush.msra.mxu0 %v1903
          %1982 = vmatpush.msra.mxu0 %v1902
          %1983 = vmatpush.msra.mxu0 %v1901
          %1984 = vmatpush.msra.mxu0 %v1900
          %1985 = vmatpush.msra.mxu0 %v1899
          %1986 = vmatpush.msra.mxu0 %v1898
          %1987 = vmatpush.msra.mxu0 %v1897
          %1988 = vmatpush.msra.mxu0 %v1896
          %1989 = vmatpush.msra.mxu0 %v1895
          %1990 = vmatpush.msra.mxu0 %v1894
          %1991 = vmatpush.msra.mxu0 %v1893
          %1992 = vmatpush.msra.mxu0 %v1892
          %1993 = vmatmul.f32.gmra.mxu0 %v1845
          %v1994 = vpop.f32.mrf.mxu0
          %v1995 = vadd.f32 %v1930, %v1994
          %1996 = vmatmul.f32.gmra.mxu0 %v1847
          %v1997 = vpop.f32.mrf.mxu0
          %v1998 = vadd.f32 %v1933, %v1997
          %1999 = vmatmul.f32.gmra.mxu0 %v1849
          %v2000 = vpop.f32.mrf.mxu0
          %v2001 = vadd.f32 %v1936, %v2000
          %2002 = vmatmul.f32.gmra.mxu0 %v1851
          %v2003 = vpop.f32.mrf.mxu0
          %v2004 = vadd.f32 %v1939, %v2003
          %2005 = vmatmul.f32.gmra.mxu0 %v1853
          %v2006 = vpop.f32.mrf.mxu0
          %v2007 = vadd.f32 %v1942, %v2006
          %2008 = vmatmul.f32.gmra.mxu0 %v1855
          %v2009 = vpop.f32.mrf.mxu0
          %v2010 = vadd.f32 %v1945, %v2009
          %2011 = vmatmul.f32.gmra.mxu0 %v1857
          %v2012 = vpop.f32.mrf.mxu0
          %v2013 = vadd.f32 %v1948, %v2012
          %2014 = vmatmul.f32.gmra.mxu0 %v1859
          %v2015 = vpop.f32.mrf.mxu0
          %v2016 = vadd.f32 %v1951, %v2015
          %2017 = vmatmul.f32.gmra.mxu0 %v1861
          %v2018 = vpop.f32.mrf.mxu0
          %v2019 = vadd.f32 %v1954, %v2018
          %2020 = vmatmul.f32.gmra.mxu0 %v1863
          %v2021 = vpop.f32.mrf.mxu0
          %v2022 = vadd.f32 %v1957, %v2021
          %2023 = vmatmul.f32.gmra.mxu0 %v1865
          %v2024 = vpop.f32.mrf.mxu0
          %v2025 = vadd.f32 %v1960, %v2024
          %2026 = vmatmul.f32.gmra.mxu0 %v1867
          %v2027 = vpop.f32.mrf.mxu0
          %v2028 = vadd.f32 %v1963, %v2027
          %2029 = vmatmul.f32.gmra.mxu0 %v1869
          %v2030 = vpop.f32.mrf.mxu0
          %v2031 = vadd.f32 %v1966, %v2030
          %2032 = vmatmul.f32.gmra.mxu0 %v1871
          %v2033 = vpop.f32.mrf.mxu0
          %v2034 = vadd.f32 %v1969, %v2033
          %2035 = vmatmul.f32.gmra.mxu0 %v1873
          %v2036 = vpop.f32.mrf.mxu0
          %v2037 = vadd.f32 %v1972, %v2036
          %2038 = vmatmul.f32.gmra.mxu0 %v1875
          %v2039 = vpop.f32.mrf.mxu0
          %v2040 = vadd.f32 %v1975, %v2039
          %2041 = vdwg.mxu0
          %v2042 = vadd.f32 %v1995, %v1998
          %v2043 = vadd.f32 %v2042, %v2001
          %v2044 = vadd.f32 %v2043, %v2004
          %v2045 = vadd.f32 %v2044, %v2007
          %v2046 = vadd.f32 %v2045, %v2010
          %v2047 = vadd.f32 %v2046, %v2013
          %v2048 = vadd.f32 %v2047, %v2016
          %v2049 = vadd.f32 %v2048, %v2019
          %v2050 = vadd.f32 %v2049, %v2022
          %v2051 = vadd.f32 %v2050, %v2025
          %v2052 = vadd.f32 %v2051, %v2028
          %v2053 = vadd.f32 %v2052, %v2031
          %v2054 = vadd.f32 %v2053, %v2034
          %v2055 = vadd.f32 %v2054, %v2037
          %v2056 = vadd.f32 %v2055, %v2040
          %v2057 = vrot.slane %v2056, 4
          %v2058 = vadd.f32 %v2056, %v2057
          %v2059 = vrot.slane %v2058, 2
          %v2060 = vadd.f32 %v2058, %v2059
          %v2061 = vrot.slane %v2060, 1
          %v2062 = vadd.f32 %v2060, %v2061
          %v2063 = vmul.f32 %v1995, %v1995
          %v2064 = vmul.f32 %v1998, %v1998
          %v2065 = vmul.f32 %v2001, %v2001
          %v2066 = vmul.f32 %v2004, %v2004
          %v2067 = vmul.f32 %v2007, %v2007
          %v2068 = vmul.f32 %v2010, %v2010
          %v2069 = vmul.f32 %v2013, %v2013
          %v2070 = vmul.f32 %v2016, %v2016
          %v2071 = vmul.f32 %v2019, %v2019
          %v2072 = vmul.f32 %v2022, %v2022
          %v2073 = vmul.f32 %v2025, %v2025
          %v2074 = vmul.f32 %v2028, %v2028
          %v2075 = vmul.f32 %v2031, %v2031
          %v2076 = vmul.f32 %v2034, %v2034
          %v2077 = vmul.f32 %v2037, %v2037
          %v2078 = vmul.f32 %v2040, %v2040
          %v2079 = vadd.f32 %v2063, %v2064
          %v2080 = vadd.f32 %v2079, %v2065
          %v2081 = vadd.f32 %v2080, %v2066
          %v2082 = vadd.f32 %v2081, %v2067
          %v2083 = vadd.f32 %v2082, %v2068
          %v2084 = vadd.f32 %v2083, %v2069
          %v2085 = vadd.f32 %v2084, %v2070
          %v2086 = vadd.f32 %v2085, %v2071
          %v2087 = vadd.f32 %v2086, %v2072
          %v2088 = vadd.f32 %v2087, %v2073
          %v2089 = vadd.f32 %v2088, %v2074
          %v2090 = vadd.f32 %v2089, %v2075
          %v2091 = vadd.f32 %v2090, %v2076
          %v2092 = vadd.f32 %v2091, %v2077
          %v2093 = vadd.f32 %v2092, %v2078
          %v2094 = vrot.slane %v2093, 4
          %v2095 = vadd.f32 %v2093, %v2094
          %v2096 = vrot.slane %v2095, 2
          %v2097 = vadd.f32 %v2095, %v2096
          %v2098 = vrot.slane %v2097, 1
          %v2099 = vadd.f32 %v2097, %v2098
          %v2100 = vmul.f32 %v2062, 0.0078125
          %v2101 = vmul.f32 %v2099, 0.0078125
          %v2102 = vmul.f32 %v2100, %v2100
          %v2103 = vsub.f32 %v2101, %v2102
          %v2104 = vsub.f32 %v1995, %v2100
          %v2105 = vsub.f32 %v1998, %v2100
          %v2106 = vsub.f32 %v2001, %v2100
          %v2107 = vsub.f32 %v2004, %v2100
          %v2108 = vsub.f32 %v2007, %v2100
          %v2109 = vsub.f32 %v2010, %v2100
          %v2110 = vsub.f32 %v2013, %v2100
          %v2111 = vsub.f32 %v2016, %v2100
          %v2112 = vsub.f32 %v2019, %v2100
          %v2113 = vsub.f32 %v2022, %v2100
          %v2114 = vsub.f32 %v2025, %v2100
          %v2115 = vsub.f32 %v2028, %v2100
          %v2116 = vsub.f32 %v2031, %v2100
          %v2117 = vsub.f32 %v2034, %v2100
          %v2118 = vsub.f32 %v2037, %v2100
          %v2119 = vsub.f32 %v2040, %v2100
          %v2120 = vadd.f32 %v2103, 1e-05
          %v2121 = vrsqrt.pop %v2120
          %v2122 = vmul.f32 %v2121, %v2120
          %v2123 = vmul.f32 %v2122, %v2121
          %v2124 = vmul.f32 0.5, %v2123
          %v2125 = vsub.f32 1.5, %v2124
          %v2126 = vmul.f32 %v2121, %v2125
          %vm2127 = vweird.f32 %v2120
          %vm2128 = vweird.f32 %v2121
          %vm2129 = vmor %vm2127, %vm2128
          %v2130 = vsel %vm2129, %v2121, %v2126
          %v2131 = vmul.f32 %v2104, %v2130
          %v2132 = vmul.f32 %v2105, %v2130
          %v2133 = vmul.f32 %v2106, %v2130
          %v2134 = vmul.f32 %v2107, %v2130
          %v2135 = vmul.f32 %v2108, %v2130
          %v2136 = vmul.f32 %v2109, %v2130
          %v2137 = vmul.f32 %v2110, %v2130
          %v2138 = vmul.f32 %v2111, %v2130
          %v2139 = vmul.f32 %v2112, %v2130
          %v2140 = vmul.f32 %v2113, %v2130
          %v2141 = vmul.f32 %v2114, %v2130
          %v2142 = vmul.f32 %v2115, %v2130
          %v2143 = vmul.f32 %v2116, %v2130
          %v2144 = vmul.f32 %v2117, %v2130
          %v2145 = vmul.f32 %v2118, %v2130
          %v2146 = vmul.f32 %v2119, %v2130
          %v2147 = vld [vmem:[%s854] sm:$0x1]
          %v2149 = vperm.slane %v2147, 0
          %v2151 = vmul.f32 %v2131, %v2149
          %v2152 = vmul.f32 %v2132, %v2149
          %v2153 = vmul.f32 %v2133, %v2149
          %v2154 = vmul.f32 %v2134, %v2149
          %v2155 = vmul.f32 %v2135, %v2149
          %v2156 = vmul.f32 %v2136, %v2149
          %v2157 = vmul.f32 %v2137, %v2149
          %v2158 = vmul.f32 %v2138, %v2149
          %v2159 = vmul.f32 %v2139, %v2149
          %v2160 = vmul.f32 %v2140, %v2149
          %v2161 = vmul.f32 %v2141, %v2149
          %v2162 = vmul.f32 %v2142, %v2149
          %v2163 = vmul.f32 %v2143, %v2149
          %v2164 = vmul.f32 %v2144, %v2149
          %v2165 = vmul.f32 %v2145, %v2149
          %v2166 = vmul.f32 %v2146, %v2149
          %v2167 = vld [vmem:[%s761] sm:$0x1]
          %v2169 = vperm.slane %v2167, 0
          %v2171 = vadd.f32 %v2151, %v2169
          %v2172 = vadd.f32 %v2152, %v2169
          %v2173 = vadd.f32 %v2153, %v2169
          %v2174 = vadd.f32 %v2154, %v2169
          %v2175 = vadd.f32 %v2155, %v2169
          %v2176 = vadd.f32 %v2156, %v2169
          %v2177 = vadd.f32 %v2157, %v2169
          %v2178 = vadd.f32 %v2158, %v2169
          %v2179 = vadd.f32 %v2159, %v2169
          %v2180 = vadd.f32 %v2160, %v2169
          %v2181 = vadd.f32 %v2161, %v2169
          %v2182 = vadd.f32 %v2162, %v2169
          %v2183 = vadd.f32 %v2163, %v2169
          %v2184 = vadd.f32 %v2164, %v2169
          %v2185 = vadd.f32 %v2165, %v2169
          %v2186 = vadd.f32 %v2166, %v2169
          %p2187 = scmp.eq.s32.totalorder %s48, 4
          %v2188 = vmax.f32 %v2171, 0.0
          %v2189 = vmax.f32 %v2172, 0.0
          %v2190 = vmax.f32 %v2173, 0.0
          %v2191 = vmax.f32 %v2174, 0.0
          %v2192 = vmax.f32 %v2175, 0.0
          %v2193 = vmax.f32 %v2176, 0.0
          %v2194 = vmax.f32 %v2177, 0.0
          %v2195 = vmax.f32 %v2178, 0.0
          %v2196 = vmax.f32 %v2179, 0.0
          %v2197 = vmax.f32 %v2180, 0.0
          %v2198 = vmax.f32 %v2181, 0.0
          %v2199 = vmax.f32 %v2182, 0.0
          %v2200 = vmax.f32 %v2183, 0.0
          %v2201 = vmax.f32 %v2184, 0.0
          %v2202 = vmax.f32 %v2185, 0.0
          %v2203 = vmax.f32 %v2186, 0.0
          %s2204 = scalar_select %p2187, 1, 0
          %v2205 = vstv %s2204
          %vm2206 = vcmp.eq.s32.totalorder %v2205, 1
          %v2207 = vsel %vm2206, %v2171, %v2188
          %v2208 = vsel %vm2206, %v2172, %v2189
          %v2209 = vsel %vm2206, %v2173, %v2190
          %v2210 = vsel %vm2206, %v2174, %v2191
          %v2211 = vsel %vm2206, %v2175, %v2192
          %v2212 = vsel %vm2206, %v2176, %v2193
          %v2213 = vsel %vm2206, %v2177, %v2194
          %v2214 = vsel %vm2206, %v2178, %v2195
          %v2215 = vsel %vm2206, %v2179, %v2196
          %v2216 = vsel %vm2206, %v2180, %v2197
          %v2217 = vsel %vm2206, %v2181, %v2198
          %v2218 = vsel %vm2206, %v2182, %v2199
          %v2219 = vsel %vm2206, %v2183, %v2200
          %v2220 = vsel %vm2206, %v2184, %v2201
          %v2221 = vsel %vm2206, %v2185, %v2202
          %v2222 = vsel %vm2206, %v2186, %v2203
          %2223 = vst [vmem:[#allocation2] sm:$0xff] %v2207
          %2224 = vst [vmem:[#allocation2 + $0x8] sm:$0xff] %v2208
          %2225 = vst [vmem:[#allocation2 + $0x10] sm:$0xff] %v2209
          %2226 = vst [vmem:[#allocation2 + $0x18] sm:$0xff] %v2210
          %2227 = vst [vmem:[#allocation2 + $0x20] sm:$0xff] %v2211
          %2228 = vst [vmem:[#allocation2 + $0x28] sm:$0xff] %v2212
          %2229 = vst [vmem:[#allocation2 + $0x30] sm:$0xff] %v2213
          %2230 = vst [vmem:[#allocation2 + $0x38] sm:$0xff] %v2214
          %2231 = vst [vmem:[#allocation2 + $0x40] sm:$0xff] %v2215
          %2232 = vst [vmem:[#allocation2 + $0x48] sm:$0xff] %v2216
          %2233 = vst [vmem:[#allocation2 + $0x50] sm:$0xff] %v2217
          %2234 = vst [vmem:[#allocation2 + $0x58] sm:$0xff] %v2218
          %2235 = vst [vmem:[#allocation2 + $0x60] sm:$0xff] %v2219
          %2236 = vst [vmem:[#allocation2 + $0x68] sm:$0xff] %v2220
          %2237 = vst [vmem:[#allocation2 + $0x70] sm:$0xff] %v2221
          %2238 = vst [vmem:[#allocation2 + $0x78] sm:$0xff] %v2222
        $region128: #{tpu_custom_call.1} parent=71 // pred_fallthru
          _
        %p2239 = scmp.eq.s32.totalorder %s48, 4
        %p2240 = pnand %p1338, %p2239
        %p2241 = pneg %p2240
        // Predicated region
        $region129: #{tpu_custom_call.1} parent=71 // pred_check
          _
        $region130: #{tpu_custom_call.1} parent=71 // pred_check_branch
          %2243 = sbr.rel (%p2240) target = $region132
        $region131: #{tpu_custom_call.1} parent=71 // pred_region
          %v2244 = vld [vmem:[#allocation2] sm:$0xff]
          %v2245 = vld [vmem:[#allocation2 + $0x8] sm:$0xff]
          %v2246 = vld [vmem:[#allocation2 + $0x10] sm:$0xff]
          %v2247 = vld [vmem:[#allocation2 + $0x18] sm:$0xff]
          %v2248 = vld [vmem:[#allocation2 + $0x20] sm:$0xff]
          %v2249 = vld [vmem:[#allocation2 + $0x28] sm:$0xff]
          %v2250 = vld [vmem:[#allocation2 + $0x30] sm:$0xff]
          %v2251 = vld [vmem:[#allocation2 + $0x38] sm:$0xff]
          %v2252 = vld [vmem:[#allocation2 + $0x40] sm:$0xff]
          %v2253 = vld [vmem:[#allocation2 + $0x48] sm:$0xff]
          %v2254 = vld [vmem:[#allocation2 + $0x50] sm:$0xff]
          %v2255 = vld [vmem:[#allocation2 + $0x58] sm:$0xff]
          %v2256 = vld [vmem:[#allocation2 + $0x60] sm:$0xff]
          %v2257 = vld [vmem:[#allocation2 + $0x68] sm:$0xff]
          %v2258 = vld [vmem:[#allocation2 + $0x70] sm:$0xff]
          %v2259 = vld [vmem:[#allocation2 + $0x78] sm:$0xff]
          %2260 = vst [vmem:[#allocation23] sm:$0xff] %v2244
          %2261 = vst [vmem:[#allocation23 + $0x8] sm:$0xff] %v2245
          %2262 = vst [vmem:[#allocation23 + $0x10] sm:$0xff] %v2246
          %2263 = vst [vmem:[#allocation23 + $0x18] sm:$0xff] %v2247
          %2264 = vst [vmem:[#allocation23 + $0x20] sm:$0xff] %v2248
          %2265 = vst [vmem:[#allocation23 + $0x28] sm:$0xff] %v2249
          %2266 = vst [vmem:[#allocation23 + $0x30] sm:$0xff] %v2250
          %2267 = vst [vmem:[#allocation23 + $0x38] sm:$0xff] %v2251
          %2268 = vst [vmem:[#allocation23 + $0x40] sm:$0xff] %v2252
          %2269 = vst [vmem:[#allocation23 + $0x48] sm:$0xff] %v2253
          %2270 = vst [vmem:[#allocation23 + $0x50] sm:$0xff] %v2254
          %2271 = vst [vmem:[#allocation23 + $0x58] sm:$0xff] %v2255
          %2272 = vst [vmem:[#allocation23 + $0x60] sm:$0xff] %v2256
          %2273 = vst [vmem:[#allocation23 + $0x68] sm:$0xff] %v2257
          %2274 = vst [vmem:[#allocation23 + $0x70] sm:$0xff] %v2258
          %2275 = vst [vmem:[#allocation23 + $0x78] sm:$0xff] %v2259
          %v2276 = vld [vmem:[#allocation13] sm:$0x1]
          %v2277 = vunpack.c.l.bf16 %v2276
          %2278 = vmatpush.msra.mxu0 %v2259
          %2279 = vmatpush.msra.mxu0 %v2258
          %2280 = vmatpush.msra.mxu0 %v2257
          %2281 = vmatpush.msra.mxu0 %v2256
          %2282 = vmatpush.msra.mxu0 %v2255
          %2283 = vmatpush.msra.mxu0 %v2254
          %2284 = vmatpush.msra.mxu0 %v2253
          %2285 = vmatpush.msra.mxu0 %v2252
          %2286 = vmatpush.msra.mxu0 %v2251
          %2287 = vmatpush.msra.mxu0 %v2250
          %2288 = vmatpush.msra.mxu0 %v2249
          %2289 = vmatpush.msra.mxu0 %v2248
          %2290 = vmatpush.msra.mxu0 %v2247
          %2291 = vmatpush.msra.mxu0 %v2246
          %2292 = vmatpush.msra.mxu0 %v2245
          %2293 = vmatpush.msra.mxu0 %v2244
          %2294 = vmatmul.f32.gmra.mxu0 %v2277
          %v2295 = vpop.f32.mrf.mxu0
          %v2296 = vadd.f32 0.0, %v2295
          %2297 = vdwg.mxu0
          %2298 = vst [vmem:[#allocation24] sm:$0x3] %v2296
        $region132: #{tpu_custom_call.1} parent=71 // pred_fallthru
          _
        // Predicated region
        $region133: #{tpu_custom_call.1} parent=71 // pred_check
          %p2299 = pneg %p397
        $region134: #{tpu_custom_call.1} parent=71 // pred_check_branch
          %2301 = sbr.rel (%p2299) target = $region136
        $region135: #{tpu_custom_call.1} parent=71 // pred_region
          %2303 = vsyncadd [#allocation7], 0
          %s2304 = sshll.u32 [#allocation23], 4
          %s2305 = int_to_ptr.vmem [resolvable:$true] %s2304
          %s2306 = sshll.u32 %s13, 4
          %s2307 = int_to_ptr.hbm [resolvable:$true] %s2306
          %2312 = dma.vmem_to_hbm [thread:$0]  %s2305, 2048, %s2307, [#allocation7], 128, 128, 8
        $region136: #{tpu_custom_call.1} parent=71 // pred_fallthru
          _
        // Predicated region
        $region137: #{tpu_custom_call.1} parent=71 // pred_check
          %p2313 = pneg %p418
        $region138: #{tpu_custom_call.1} parent=71 // pred_check_branch
          %2315 = sbr.rel (%p2313) target = $region140
        $region139: #{tpu_custom_call.1} parent=71 // pred_region
          %2317 = vsyncadd [#allocation25], 0
          %s2319 = sshll.u32 [#allocation24], 4
          %s2320 = int_to_ptr.vmem [resolvable:$true] %s2319
          %s2321 = sshll.u32 %s14, 4
          %s2322 = int_to_ptr.hbm [resolvable:$true] %s2321
          %2324 = dma.vmem_to_hbm [thread:$0]  %s2320, 32, %s2322, [#allocation25]
        $region140: #{tpu_custom_call.1} parent=71 // pred_fallthru
          _
        // Predicated region
        $region141: #{tpu_custom_call.1} parent=71 // pred_check
          %p2325 = pneg %p397
        $region142: #{tpu_custom_call.1} parent=71 // pred_check_branch
          %2327 = sbr.rel (%p2325) target = $region144
        $region143: #{tpu_custom_call.1} parent=71 // pred_region
          %2329 = dma.done [#allocation7], 2048
        $region144: #{tpu_custom_call.1} parent=71 // pred_fallthru
          _
        // Predicated region
        $region145: #{tpu_custom_call.1} parent=71 // pred_check
          %p2330 = pneg %p418
        $region146: #{tpu_custom_call.1} parent=71 // pred_check_branch
          %2332 = sbr.rel (%p2330) target = $region148
        $region147: #{tpu_custom_call.1} parent=71 // pred_region
          %2334 = dma.done [#allocation25], 32
        $region148: #{tpu_custom_call.1} parent=71 // pred_fallthru
          _
      $region72: #{tpu_custom_call.1} parent=5 // pred_fallthru
        _
      %p2335 = scmp.le.s32.totalorder 2, %s39
      // Predicated region
      $region149: #{tpu_custom_call.1} parent=5 // pred_check
        %p2336 = pneg %p2335
      $region150: #{tpu_custom_call.1} parent=5 // pred_check_branch
        %2338 = sbr.rel (%p2336) target = $region152
      $region151: #{tpu_custom_call.1} parent=5 // pred_region
        %s2339 = ssub.s32 %s39, 2
      $region152: #{tpu_custom_call.1} parent=5 // pred_fallthru
        _
    $region6: #{tpu_custom_call.1} parent=1 // loop_footer
      %s43 = sadd.s32 1, %s39
    $region7: #{tpu_custom_call.1} parent=1 // loop_footer_branch
      %38 = sbr.rel target = $region3
    $region8: #{tpu_custom_call.1} parent=1 // loop_exit
      _
    %2340 = vsyncpa [#allocation6], 1
    %s2341 = scalar_lea.sflag [#allocation6], 1
    %2342 = vsyncpa %s2341, 1
    %2343 = vsyncpa [#allocation9], 1
    %s2344 = scalar_lea.sflag [#allocation9], 1
    %2345 = vsyncpa %s2344, 1
    %2346 = vsyncpa [#allocation12], 1
    %s2347 = scalar_lea.sflag [#allocation12], 1
    %2348 = vsyncpa %s2347, 1
    %2349 = vsyncpa [#allocation15], 1
    %s2350 = scalar_lea.sflag [#allocation15], 1
    %2351 = vsyncpa %s2350, 1
    %2352 = vsyncpa [#allocation18], 1
    %s2353 = scalar_lea.sflag [#allocation18], 1
    %2354 = vsyncpa %s2353, 1
    %2355 = vsyncpa [#allocation21], 1
    %s2356 = scalar_lea.sflag [#allocation21], 1
    %2357 = vsyncpa %s2356, 1
    %2358 = vsyncpa [#allocation7], 1
    %s2359 = scalar_lea.sflag [#allocation7], 1
    %2360 = vsyncpa %s2359, 1
    %2361 = vsyncpa [#allocation25], 1

</llo_original>
